<compile_context>
chip_gen: v7x
topology: tpu7x:2x2x1
jax: 0.10.0
libtpu: 0.0.40
codegen_flags: <defaults>
</compile_context>

<pallas_src>
import jax
import jax.numpy as jnp
from jax import lax
from jax.experimental import pallas as pl
from jax.experimental.pallas import tpu as pltpu

IN_F = 4 * 9      # 36
H = 512
OUT_F = 1

_TB_MULT = 256    # v6e/v7x MXU is 256x256; keep M tiles a multiple of 256
_TB_MAX = 2048    # VMEM-safe on every generation (incl. v5e / v7x per-TC)


def mlp_kernel(x_ref, w1_ref, b1_ref, w2_ref, b2_ref, w3_ref, b3_ref, o_ref):
    # fc1 + relu   (bf16 MXU, f32 accumulation); K=36, Mosaic pads internally.
    h = jnp.dot(x_ref[...], w1_ref[...], preferred_element_type=jnp.float32)
    h = jnp.maximum(h + b1_ref[...], 0.0)
    # fc2 + relu
    h = jnp.dot(h.astype(jnp.bfloat16), w2_ref[...],
                preferred_element_type=jnp.float32)
    h = jnp.maximum(h + b2_ref[...], 0.0)
    # fc3 + relu: contract the (1, 512) w3 row against h over the feature dim,
    # producing the lane-dense (1, tb) output row directly.
    y = lax.dot_general(w3_ref[...], h.astype(jnp.bfloat16),
                        dimension_numbers=(((1,), (1,)), ((), ())),
                        preferred_element_type=jnp.float32)        # (1, tb)
    o_ref[...] = jnp.maximum(y + b3_ref[0, 0], 0.0)


def prepare_params(params):
    """One-time weight preprocessing (hoisted out of the per-call wrapper)."""
    return dict(
        w1=params["w1"].astype(jnp.bfloat16),                       # (36, 512)
        b1=params["b1"].reshape(1, H).astype(jnp.float32),
        w2=params["w2"].astype(jnp.bfloat16),                       # (512, 512)
        b2=params["b2"].reshape(1, H).astype(jnp.float32),
        w3=params["w3"].reshape(H, OUT_F).T.astype(jnp.bfloat16),   # (1, 512)
        b3=params["b3"].reshape(1, 1).astype(jnp.float32),          # SMEM scalar
    )


def _choose_tb(B):
    """Multiple of 256, capped at 2048, keeping >= 2 grid steps when B allows."""
    if B <= _TB_MULT:
        return _TB_MULT
    tb = max(_TB_MULT, (B // 2) // _TB_MULT * _TB_MULT)
    return min(_TB_MAX, tb)


def testnet_forward(x, prep, *, tb=None):
    """x: [B, 36] float32. prep: output of prepare_params().
    Returns [B, 1] float32 (matches torch testNet.forward)."""
    B, F = x.shape
    assert F == IN_F
    if tb is None:
        tb = _choose_tb(B)
    n_tiles = pl.cdiv(B, tb)
    B_pad = n_tiles * tb

    # Only the activation is touched per call: pad batch to a tile multiple and
    # cast to bf16 (72 B/row of HBM traffic).
    x_p = x if B_pad == B else jnp.pad(x, ((0, B_pad - B), (0, 0)))
    x_p = x_p.astype(jnp.bfloat16)

    full = lambda shape: pl.BlockSpec(shape, lambda i: tuple(0 for _ in shape))

    weight_bytes = (IN_F * H + H * H + H) * 2 + (H + H + 1) * 4
    cost = pl.CostEstimate(
        flops=2 * B_pad * (IN_F * H + H * H + H * OUT_F),
        transcendentals=0,
        bytes_accessed=B_pad * (IN_F * 2 + OUT_F * 4) + weight_bytes,
    )

    out = pl.pallas_call(
        mlp_kernel,
        out_shape=jax.ShapeDtypeStruct((1, B_pad), jnp.float32),
        grid_spec=pltpu.PrefetchScalarGridSpec(
            num_scalar_prefetch=0,
            grid=(n_tiles,),
            in_specs=[
                pl.BlockSpec((tb, IN_F), lambda i: (i, 0)),          # x tile
                full((IN_F, H)),                                     # w1 (resident)
                full((1, H)),                                        # b1
                full((H, H)),                                        # w2 (resident)
                full((1, H)),                                        # b2
                full((1, H)),                                        # w3 row
                pl.BlockSpec(memory_space=pltpu.MemorySpace.SMEM),   # b3 scalar
            ],
            # Lane-dense output: one (1, tb) row per grid step.
            out_specs=pl.BlockSpec((1, tb), lambda i: (0, i)),
        ),
        compiler_params=pltpu.CompilerParams(
            dimension_semantics=("parallel",),   # shards grid across TCs on v7x
            vmem_limit_bytes=32 * 1024 * 1024,   # raises v5e's 16 MiB default
        ),
        cost_estimate=cost,
    )(x_p, prep["w1"], prep["b1"], prep["w2"], prep["b2"], prep["w3"], prep["b3"])

    return out.reshape(B_pad, OUT_F)[:B]


def init_params(key):
    """Deterministic init mirroring nn.Linear default (uniform(-1/sqrt(in), 1/sqrt(in)))."""
    def linear(key, fan_in, fan_out):
        kw, kb = jax.random.split(key)
        bound = 1.0 / jnp.sqrt(jnp.float32(fan_in))
        w = jax.random.uniform(kw, (fan_in, fan_out), jnp.float32, -bound, bound)
        b = jax.random.uniform(kb, (1, fan_out), jnp.float32, -bound, bound)
        return w, b

    k1, k2, k3 = jax.random.split(key, 3)
    w1, b1 = linear(k1, IN_F, H)
    w2, b2 = linear(k2, H, H)
    w3, b3 = linear(k3, H, OUT_F)
    return dict(w1=w1, b1=b1, w2=w2, b2=b2, w3=w3, b3=b3)


def reference_forward(x, p):
    # Pure-f32 reference matching the torch forward (ReLU after every layer).
    h = jnp.maximum(x @ p["w1"] + p["b1"], 0.0)
    h = jnp.maximum(h @ p["w2"] + p["b2"], 0.0)
    h = jnp.maximum(h @ p["w3"] + p["b3"], 0.0)
    return h


if __name__ == "__main__":
    key = jax.random.PRNGKey(0)
    kp, kx = jax.random.split(key)
    params = init_params(kp)
    prep = prepare_params(params)          # one-time weight preprocessing

    # B=512 -> tb=256 auto-selected: a 2-step parallel grid (both v7x TCs busy)
    # while still a tiny problem (36 input features).
    B = 512
    x = jax.random.normal(kx, (B, IN_F), jnp.float32)

    out = jax.block_until_ready(testnet_forward(x, prep))

    ref = reference_forward(x, params)
    assert out.shape == (B, OUT_F)
    # bf16 matmul operands (f32 accumulation) -> loosened tolerance vs f32 ref.
    assert jnp.allclose(out, ref, atol=2e-2, rtol=2e-2), float(
        jnp.max(jnp.abs(out - ref)))

    print("KERNEL_OK")
</pallas_src>

<mosaic_0001>
module attributes {stable_mosaic.version = 11 : i64} {
  func.func @mlp_kernel(%arg0: i32, %arg1: memref<256x36xbf16, #tpu.memory_space<vmem>>, %arg2: memref<36x512xbf16, #tpu.memory_space<vmem>>, %arg3: memref<1x512xf32, #tpu.memory_space<vmem>>, %arg4: memref<512x512xbf16, #tpu.memory_space<vmem>>, %arg5: memref<1x512xf32, #tpu.memory_space<vmem>>, %arg6: memref<1x512xbf16, #tpu.memory_space<vmem>>, %arg7: memref<1x1xf32, #tpu.memory_space<smem>>, %arg8: memref<1x256xf32, #tpu.memory_space<vmem>>) attributes {dimension_semantics = [#tpu.dimension_semantics<parallel>], iteration_bounds = array<i64: 2>, scalar_prefetch = 0 : i64, scratch_operands = 0 : i64, tpu.core_type = #tpu.core_type<tc>, window_params = [{transform_indices = @transform_0, window_bounds = array<i64: 256, 36>}, {pipeline_mode = #tpu.pipeline_mode<synchronous>, transform_indices = @transform_1, window_bounds = array<i64: 36, 512>}, {pipeline_mode = #tpu.pipeline_mode<synchronous>, transform_indices = @transform_2, window_bounds = array<i64: 1, 512>}, {pipeline_mode = #tpu.pipeline_mode<synchronous>, transform_indices = @transform_3, window_bounds = array<i64: 512, 512>}, {pipeline_mode = #tpu.pipeline_mode<synchronous>, transform_indices = @transform_4, window_bounds = array<i64: 1, 512>}, {pipeline_mode = #tpu.pipeline_mode<synchronous>, transform_indices = @transform_5, window_bounds = array<i64: 1, 512>}, {transform_indices = @transform_6, window_bounds = array<i64: 1, 1>}, {transform_indices = @transform_7, window_bounds = array<i64: 1, 256>}]} {
    %c0 = arith.constant 0 : index
    %c0_0 = arith.constant 0 : index
    %0 = vector.load %arg1[%c0, %c0_0] : memref<256x36xbf16, #tpu.memory_space<vmem>>, vector<256x36xbf16>
    %c0_1 = arith.constant 0 : index
    %c0_2 = arith.constant 0 : index
    %1 = vector.load %arg2[%c0_1, %c0_2] : memref<36x512xbf16, #tpu.memory_space<vmem>>, vector<36x512xbf16>
    %cst = arith.constant dense<0.000000e+00> : vector<256x512xf32>
    %2 = tpu.matmul %0, %1, %cst {dimension_numbers = #tpu.dot_dimension_numbers<[1], [0], [0], [1], [0, 0, 1, 1], [], []>} : vector<256x36xbf16>, vector<36x512xbf16>, vector<256x512xf32> -> vector<256x512xf32>
    %c0_3 = arith.constant 0 : index
    %c0_4 = arith.constant 0 : index
    %3 = vector.load %arg3[%c0_3, %c0_4] : memref<1x512xf32, #tpu.memory_space<vmem>>, vector<1x512xf32>
    %4 = vector.broadcast %3 : vector<1x512xf32> to vector<256x512xf32>
    %5 = arith.addf %2, %4 : vector<256x512xf32>
    %cst_5 = arith.constant 0.000000e+00 : f32
    %6 = vector.broadcast %cst_5 : f32 to vector<256x512xf32>
    %7 = arith.maximumf %5, %6 : vector<256x512xf32>
    %8 = arith.truncf %7 : vector<256x512xf32> to vector<256x512xbf16>
    %c0_6 = arith.constant 0 : index
    %c0_7 = arith.constant 0 : index
    %9 = vector.load %arg4[%c0_6, %c0_7] : memref<512x512xbf16, #tpu.memory_space<vmem>>, vector<512x512xbf16>
    %cst_8 = arith.constant dense<0.000000e+00> : vector<256x512xf32>
    %10 = tpu.matmul %8, %9, %cst_8 {dimension_numbers = #tpu.dot_dimension_numbers<[1], [0], [0], [1], [0, 0, 1, 1], [], []>} : vector<256x512xbf16>, vector<512x512xbf16>, vector<256x512xf32> -> vector<256x512xf32>
    %c0_9 = arith.constant 0 : index
    %c0_10 = arith.constant 0 : index
    %11 = vector.load %arg5[%c0_9, %c0_10] : memref<1x512xf32, #tpu.memory_space<vmem>>, vector<1x512xf32>
    %12 = vector.broadcast %11 : vector<1x512xf32> to vector<256x512xf32>
    %13 = arith.addf %10, %12 : vector<256x512xf32>
    %cst_11 = arith.constant 0.000000e+00 : f32
    %14 = vector.broadcast %cst_11 : f32 to vector<256x512xf32>
    %15 = arith.maximumf %13, %14 : vector<256x512xf32>
    %c0_12 = arith.constant 0 : index
    %c0_13 = arith.constant 0 : index
    %16 = vector.load %arg6[%c0_12, %c0_13] : memref<1x512xbf16, #tpu.memory_space<vmem>>, vector<1x512xbf16>
    %17 = arith.truncf %15 : vector<256x512xf32> to vector<256x512xbf16>
    %cst_14 = arith.constant dense<0.000000e+00> : vector<1x256xf32>
    %18 = tpu.matmul %16, %17, %cst_14 {dimension_numbers = #tpu.dot_dimension_numbers<[1], [1], [0], [0], [0, 0, 1, 0], [], []>} : vector<1x512xbf16>, vector<256x512xbf16>, vector<1x256xf32> -> vector<1x256xf32>
    %c0_15 = arith.constant 0 : index
    %c0_16 = arith.constant 0 : index
    %19 = memref.load %arg7[%c0_15, %c0_16] : memref<1x1xf32, #tpu.memory_space<smem>>
    %20 = vector.broadcast %19 : f32 to vector<1x256xf32>
    %21 = arith.addf %18, %20 : vector<1x256xf32>
    %cst_17 = arith.constant 0.000000e+00 : f32
    %22 = vector.broadcast %cst_17 : f32 to vector<1x256xf32>
    %23 = arith.maximumf %21, %22 : vector<1x256xf32>
    %c0_18 = arith.constant 0 : index
    %c0_19 = arith.constant 0 : index
    %24 = vector.load %arg8[%c0_18, %c0_19] : memref<1x256xf32, #tpu.memory_space<vmem>>, vector<1x256xf32>
    tpu.vector_store %arg8[%c0_18, %c0_19], %23 {strides = array<i32>} : memref<1x256xf32, #tpu.memory_space<vmem>>, vector<1x256xf32>,
    return
  }
  func.func @transform_0(%arg0: i32) -> (i32, i32) {
    %c0_i32 = arith.constant 0 : i32
    %c0_i32_0 = arith.constant 0 : i32
    return %arg0, %c0_i32 : i32, i32
  }
  func.func @transform_1(%arg0: i32) -> (i32, i32) {
    %c0_i32 = arith.constant 0 : i32
    %c0_i32_0 = arith.constant 0 : i32
    %c0_i32_1 = arith.constant 0 : i32
    return %c0_i32, %c0_i32_0 : i32, i32
  }
  func.func @transform_2(%arg0: i32) -> (i32, i32) {
    %c0_i32 = arith.constant 0 : i32
    %c0_i32_0 = arith.constant 0 : i32
    %c0_i32_1 = arith.constant 0 : i32
    return %c0_i32, %c0_i32_0 : i32, i32
  }
  func.func @transform_3(%arg0: i32) -> (i32, i32) {
    %c0_i32 = arith.constant 0 : i32
    %c0_i32_0 = arith.constant 0 : i32
    %c0_i32_1 = arith.constant 0 : i32
    return %c0_i32, %c0_i32_0 : i32, i32
  }
  func.func @transform_4(%arg0: i32) -> (i32, i32) {
    %c0_i32 = arith.constant 0 : i32
    %c0_i32_0 = arith.constant 0 : i32
    %c0_i32_1 = arith.constant 0 : i32
    return %c0_i32, %c0_i32_0 : i32, i32
  }
  func.func @transform_5(%arg0: i32) -> (i32, i32) {
    %c0_i32 = arith.constant 0 : i32
    %c0_i32_0 = arith.constant 0 : i32
    %c0_i32_1 = arith.constant 0 : i32
    return %c0_i32, %c0_i32_0 : i32, i32
  }
  func.func @transform_6(%arg0: i32) -> (i32, i32) {
    %c0_i32 = arith.constant 0 : i32
    %c0_i32_0 = arith.constant 0 : i32
    %c0_i32_1 = arith.constant 0 : i32
    return %c0_i32, %c0_i32_0 : i32, i32
  }
  func.func @transform_7(%arg0: i32) -> (i32, i32) {
    %c0_i32 = arith.constant 0 : i32
    %c0_i32_0 = arith.constant 0 : i32
    return %c0_i32, %arg0 : i32, i32
  }
}

</mosaic_0001>

<llo_original>
// kernel: tpu_custom_call.1
$region0: #{tpu_custom_call.1}
  #allocation0 [shape = 'u32[]', space=smem, size = 0x4, offset = 0x4, fixed_abs, tag = 'smem constant byte address 0x4 - core index']
  #allocation1 [shape = 'u32[144,128]{1,0:T(1,128)}', space=vmem, size = 0x12000, scoped, tag = 'internal scratch']
  #allocation2 [shape = 'f32[1,1]{1,0:T(1,128)S(6)}', space=smem, size = 0x200, scoped, tag = 'scoped memory for tpu_custom_call.1']
  %s0 = inlined_call_operand.vmem [shape: bf16[512,36], index: 0, kind: input, shape index: {}]
  %s1 = inlined_call_operand.vmem [shape: bf16[36,512], index: 1, kind: input, shape index: {}]
  %s2 = inlined_call_operand.vmem [shape: f32[1,512], index: 2, kind: input, shape index: {}]
  %s3 = inlined_call_operand.hbm [shape: bf16[512,512], index: 3, kind: input, shape index: {}]
  %s4 = inlined_call_operand.vmem [shape: f32[1,512], index: 4, kind: input, shape index: {}]
  %s5 = inlined_call_operand.vmem [shape: bf16[1,512], index: 5, kind: input, shape index: {}]
  %s6 = inlined_call_operand.<no memory space> [shape: f32[1,1], index: 6, kind: input, shape index: {}]
  %s7 = inlined_call_operand.hbm [shape: f32[1,512], index: 7, kind: output, shape index: {}]
  %s8 = sld [smem:[#allocation0]]
  $region65: #{tpu_custom_call.1} parent=0
    _
  %s10 = ssub.s32 1, %s8
  %s11 = scalar_select 0, %s10, %s8
  %12 = sst [smem:[#allocation2]] %s6
  $region1: #{tpu_custom_call.1} parent=0
    #allocation3 [shape = 'u8[524288]{0}', space=vmem, size = 0x80000, scoped, tag = 'input window, operand 3, single buffered']
    #allocation4 [shape = 's32[2]{0}', space=sflag, size = 0x8, scoped, tag = 'scoped memory for tpu_custom_call.1']
    #allocation5 [shape = 's32[2]{0}', space=sflag, size = 0x8, scoped, tag = 'scoped memory for tpu_custom_call.1']
    #allocation6 [shape = 'u8[2048]{0}', space=vmem, size = 0x800, scoped, tag = 'output window, operand 0']
    %13 = vsyncpa [#allocation4], 0
    %14 = vsyncpa [#allocation5], 0
    %s15 = scalar_lea.sflag [#allocation5], 1
    %16 = vsyncpa %s15, 0
    loop: start=0, step=1, limit=4
    $region2: #{tpu_custom_call.1} parent=1 // loop_pre_header
      _
    $region3: #{tpu_custom_call.1} parent=1 // loop_header
      %s18 = sphi 0, %s22
      %p19 = scmp.ge.s32.totalorder %s18, 4
      %s28 = sphi 0, %s30
      %s31 = sphi 0, %s28
      %s32 = sphi 0, %s31
      %s48 = sphi 0, %s32
      %s52 = sphi 0, %s52
      %s54 = sphi 0, %s52
      %s55 = sphi 0, %s54
      %s69 = sphi 0, %s55
      %s73 = sphi 0, %s73
      %s75 = sphi 0, %s73
      %s76 = sphi 0, %s75
      %s90 = sphi 0, %s76
      %s94 = sphi 0, %s94
      %s96 = sphi 0, %s94
      %s97 = sphi 0, %s96
      %s111 = sphi 0, %s97
      %s115 = sphi 0, %s115
      %s117 = sphi 0, %s115
      %s118 = sphi 0, %s117
      %s132 = sphi 0, %s118
      %s136 = sphi 0, %s136
      %s138 = sphi 0, %s136
      %s139 = sphi 0, %s138
      %s153 = sphi 0, %s139
      %s157 = sphi 0, %s157
      %s159 = sphi 0, %s157
      %s160 = sphi 0, %s159
      %s174 = sphi 0, %s160
      %s180 = sphi 0, %s182
      %s183 = sphi 0, %s180
      %s184 = sphi 0, %s183
      %s200 = sphi 0, %s184
    $region4: #{tpu_custom_call.1} parent=1 // loop_header_branch
      %21 = sbr.rel (%p19) target = $region8
    $region5: #{tpu_custom_call.1} parent=1 // loop_body
      %s23 = ssub.s32 %s18, 1
      %s24 = ssub.s32 %s18, 2
      %s25 = sadd.s32 %s18, 1
      %s26 = ssub.s32 %s18, %s25
      %p27 = scmp.eq.s32.totalorder %s26, 0
      %s29 = sadd.s32 %s28, 1
      %s30 = scalar_select %p27, %s28, %s29
      %p33 = pneg %p27
      %p34 = scmp.eq.s32.totalorder %s18, 1
      %p35 = por %p33, %p34
      %p36 = scmp.ne.s32.totalorder %s28, %s31
      %p37 = scmp.eq.s32.totalorder %s18, 0
      %p38 = por %p36, %p37
      %p39 = scmp.ne.s32.totalorder %s28, %s31
      %p40 = scmp.eq.s32.totalorder %s23, 1
      %p41 = por %p39, %p40
      %p42 = scmp.ne.s32.totalorder %s31, %s32
      %p43 = scmp.eq.s32.totalorder %s23, 0
      %p44 = por %p42, %p43
      %p45 = scmp.ne.s32.totalorder %s31, %s32
      %p46 = scmp.eq.s32.totalorder %s24, 1
      %p47 = por %p45, %p46
      %p49 = scmp.ne.s32.totalorder %s32, %s48
      %p50 = scmp.eq.s32.totalorder %s24, 0
      %p51 = por %p49, %p50
      %s53 = sadd.s32 %s52, 1
      %p56 = scmp.eq.s32.totalorder %s18, 1
      %p57 = scmp.ne.s32.totalorder %s52, %s54
      %p58 = scmp.eq.s32.totalorder %s18, 0
      %p59 = por %p57, %p58
      %p60 = scmp.ne.s32.totalorder %s52, %s54
      %p61 = scmp.eq.s32.totalorder %s23, 1
      %p62 = por %p60, %p61
      %p63 = scmp.ne.s32.totalorder %s54, %s55
      %p64 = scmp.eq.s32.totalorder %s23, 0
      %p65 = por %p63, %p64
      %p66 = scmp.ne.s32.totalorder %s54, %s55
      %p67 = scmp.eq.s32.totalorder %s24, 1
      %p68 = por %p66, %p67
      %p70 = scmp.ne.s32.totalorder %s55, %s69
      %p71 = scmp.eq.s32.totalorder %s24, 0
      %p72 = por %p70, %p71
      %s74 = sadd.s32 %s73, 1
      %p77 = scmp.eq.s32.totalorder %s18, 1
      %p78 = scmp.ne.s32.totalorder %s73, %s75
      %p79 = scmp.eq.s32.totalorder %s18, 0
      %p80 = por %p78, %p79
      %p81 = scmp.ne.s32.totalorder %s73, %s75
      %p82 = scmp.eq.s32.totalorder %s23, 1
      %p83 = por %p81, %p82
      %p84 = scmp.ne.s32.totalorder %s75, %s76
      %p85 = scmp.eq.s32.totalorder %s23, 0
      %p86 = por %p84, %p85
      %p87 = scmp.ne.s32.totalorder %s75, %s76
      %p88 = scmp.eq.s32.totalorder %s24, 1
      %p89 = por %p87, %p88
      %p91 = scmp.ne.s32.totalorder %s76, %s90
      %p92 = scmp.eq.s32.totalorder %s24, 0
      %p93 = por %p91, %p92
      %s95 = sadd.s32 %s94, 1
      %p98 = scmp.eq.s32.totalorder %s18, 1
      %p99 = scmp.ne.s32.totalorder %s94, %s96
      %p100 = scmp.eq.s32.totalorder %s18, 0
      %p101 = por %p99, %p100
      %p102 = scmp.ne.s32.totalorder %s94, %s96
      %p103 = scmp.eq.s32.totalorder %s23, 1
      %p104 = por %p102, %p103
      %p105 = scmp.ne.s32.totalorder %s96, %s97
      %p106 = scmp.eq.s32.totalorder %s23, 0
      %p107 = por %p105, %p106
      %p108 = scmp.ne.s32.totalorder %s96, %s97
      %p109 = scmp.eq.s32.totalorder %s24, 1
      %p110 = por %p108, %p109
      %p112 = scmp.ne.s32.totalorder %s97, %s111
      %p113 = scmp.eq.s32.totalorder %s24, 0
      %p114 = por %p112, %p113
      %s116 = sadd.s32 %s115, 1
      %p119 = scmp.eq.s32.totalorder %s18, 1
      %p120 = scmp.ne.s32.totalorder %s115, %s117
      %p121 = scmp.eq.s32.totalorder %s18, 0
      %p122 = por %p120, %p121
      %p123 = scmp.ne.s32.totalorder %s115, %s117
      %p124 = scmp.eq.s32.totalorder %s23, 1
      %p125 = por %p123, %p124
      %p126 = scmp.ne.s32.totalorder %s117, %s118
      %p127 = scmp.eq.s32.totalorder %s23, 0
      %p128 = por %p126, %p127
      %p129 = scmp.ne.s32.totalorder %s117, %s118
      %p130 = scmp.eq.s32.totalorder %s24, 1
      %p131 = por %p129, %p130
      %p133 = scmp.ne.s32.totalorder %s118, %s132
      %p134 = scmp.eq.s32.totalorder %s24, 0
      %p135 = por %p133, %p134
      %s137 = sadd.s32 %s136, 1
      %p140 = scmp.eq.s32.totalorder %s18, 1
      %p141 = scmp.ne.s32.totalorder %s136, %s138
      %p142 = scmp.eq.s32.totalorder %s18, 0
      %p143 = por %p141, %p142
      %p144 = scmp.ne.s32.totalorder %s136, %s138
      %p145 = scmp.eq.s32.totalorder %s23, 1
      %p146 = por %p144, %p145
      %p147 = scmp.ne.s32.totalorder %s138, %s139
      %p148 = scmp.eq.s32.totalorder %s23, 0
      %p149 = por %p147, %p148
      %p150 = scmp.ne.s32.totalorder %s138, %s139
      %p151 = scmp.eq.s32.totalorder %s24, 1
      %p152 = por %p150, %p151
      %p154 = scmp.ne.s32.totalorder %s139, %s153
      %p155 = scmp.eq.s32.totalorder %s24, 0
      %p156 = por %p154, %p155
      %s158 = sadd.s32 %s157, 1
      %p161 = scmp.eq.s32.totalorder %s18, 1
      %p162 = scmp.ne.s32.totalorder %s157, %s159
      %p163 = scmp.eq.s32.totalorder %s18, 0
      %p164 = por %p162, %p163
      %p165 = scmp.ne.s32.totalorder %s157, %s159
      %p166 = scmp.eq.s32.totalorder %s23, 1
      %p167 = por %p165, %p166
      %p168 = scmp.ne.s32.totalorder %s159, %s160
      %p169 = scmp.eq.s32.totalorder %s23, 0
      %p170 = por %p168, %p169
      %p171 = scmp.ne.s32.totalorder %s159, %s160
      %p172 = scmp.eq.s32.totalorder %s24, 1
      %p173 = por %p171, %p172
      %p175 = scmp.ne.s32.totalorder %s160, %s174
      %p176 = scmp.eq.s32.totalorder %s24, 0
      %p177 = por %p175, %p176
      %s178 = ssub.s32 %s18, %s25
      %p179 = scmp.eq.s32.totalorder %s178, 0
      %s181 = sadd.s32 %s180, 1
      %s182 = scalar_select %p179, %s180, %s181
      %p185 = pneg %p179
      %p186 = scmp.eq.s32.totalorder %s18, 1
      %p187 = por %p185, %p186
      %p188 = scmp.ne.s32.totalorder %s180, %s183
      %p189 = scmp.eq.s32.totalorder %s18, 0
      %p190 = por %p188, %p189
      %p191 = scmp.ne.s32.totalorder %s180, %s183
      %p192 = scmp.eq.s32.totalorder %s23, 1
      %p193 = por %p191, %p192
      %p194 = scmp.ne.s32.totalorder %s183, %s184
      %p195 = scmp.eq.s32.totalorder %s23, 0
      %p196 = por %p194, %p195
      %p197 = scmp.ne.s32.totalorder %s183, %s184
      %p198 = scmp.eq.s32.totalorder %s24, 1
      %p199 = por %p197, %p198
      %p201 = scmp.ne.s32.totalorder %s184, %s200
      %p202 = scmp.eq.s32.totalorder %s24, 0
      %p203 = por %p201, %p202
      %p204 = scmp.le.s32.totalorder 1, %s18
      %p205 = scmp.lt.s32.totalorder %s18, 3
      %p206 = pnand %p204, %p205
      %p207 = pneg %p206
      // Predicated region
      $region9: #{tpu_custom_call.1} parent=5 // pred_check
        _
      $region10: #{tpu_custom_call.1} parent=5 // pred_check_branch
        %209 = sbr.rel (%p206) target = $region12
      $region11: #{tpu_custom_call.1} parent=5 // pred_region
        %s210 = ssub.s32 %s18, 1
        // Predicated region
        $region13: #{tpu_custom_call.1} parent=11 // pred_check
          %p211 = pneg %p65
        $region14: #{tpu_custom_call.1} parent=11 // pred_check_branch
          %213 = sbr.rel (%p211) target = $region16
        $region15: #{tpu_custom_call.1} parent=11 // pred_region
          _
        $region16: #{tpu_custom_call.1} parent=11 // pred_fallthru
          _
        // Predicated region
        $region17: #{tpu_custom_call.1} parent=11 // pred_check
          %p214 = pneg %p86
        $region18: #{tpu_custom_call.1} parent=11 // pred_check_branch
          %216 = sbr.rel (%p214) target = $region20
        $region19: #{tpu_custom_call.1} parent=11 // pred_region
          _
        $region20: #{tpu_custom_call.1} parent=11 // pred_fallthru
          _
        // Predicated region
        $region21: #{tpu_custom_call.1} parent=11 // pred_check
          %p217 = pneg %p107
        $region22: #{tpu_custom_call.1} parent=11 // pred_check_branch
          %219 = sbr.rel (%p217) target = $region24
        $region23: #{tpu_custom_call.1} parent=11 // pred_region
          %s221 = ssub.s32 16384, 16384
          %222 = vsyncadd [#allocation4], %s221
          %s223 = sshll.u32 [#allocation3], 4
          %s224 = int_to_ptr.vmem [resolvable:$true] %s223
          %229 = dma.hbm_to_vmem [thread:$0]  %s3, 16384, %s224, [#allocation4], 256, 256, 16
        $region24: #{tpu_custom_call.1} parent=11 // pred_fallthru
          _
        // Predicated region
        $region25: #{tpu_custom_call.1} parent=11 // pred_check
          %p230 = pneg %p128
        $region26: #{tpu_custom_call.1} parent=11 // pred_check_branch
          %232 = sbr.rel (%p230) target = $region28
        $region27: #{tpu_custom_call.1} parent=11 // pred_region
          _
        $region28: #{tpu_custom_call.1} parent=11 // pred_fallthru
          _
        // Predicated region
        $region29: #{tpu_custom_call.1} parent=11 // pred_check
          %p233 = pneg %p149
        $region30: #{tpu_custom_call.1} parent=11 // pred_check_branch
          %235 = sbr.rel (%p233) target = $region32
        $region31: #{tpu_custom_call.1} parent=11 // pred_region
          _
        $region32: #{tpu_custom_call.1} parent=11 // pred_fallthru
          _
        // Predicated region
        $region33: #{tpu_custom_call.1} parent=11 // pred_check
          %p236 = pneg %p170
        $region34: #{tpu_custom_call.1} parent=11 // pred_check_branch
          %238 = sbr.rel (%p236) target = $region36
        $region35: #{tpu_custom_call.1} parent=11 // pred_region
          _
        $region36: #{tpu_custom_call.1} parent=11 // pred_fallthru
          _
      $region12: #{tpu_custom_call.1} parent=5 // pred_fallthru
        _
      %p239 = scmp.lt.s32.totalorder %s18, 2
      // Predicated region
      $region37: #{tpu_custom_call.1} parent=5 // pred_check
        %p240 = pneg %p239
      $region38: #{tpu_custom_call.1} parent=5 // pred_check_branch
        %242 = sbr.rel (%p240) target = $region40
      $region39: #{tpu_custom_call.1} parent=5 // pred_region
        // Predicated region
        $region41: #{tpu_custom_call.1} parent=39 // pred_check
          %p243 = pneg %p38
        $region42: #{tpu_custom_call.1} parent=39 // pred_check_branch
          %245 = sbr.rel (%p243) target = $region44
        $region43: #{tpu_custom_call.1} parent=39 // pred_region
          %s246 = smul.u32 32, %s18
          %p247 = scmp.lt.s32.totalorder %s246, 63
          %s248 = scalar_select %p247, %s246, 63
          %s249 = smul.addr %s248, 4
          %s250 = scalar_lea.vmem %s0, %s249
          %s251 = smul.u32 32, %s18
        $region44: #{tpu_custom_call.1} parent=39 // pred_fallthru
          _
      $region40: #{tpu_custom_call.1} parent=5 // pred_fallthru
        _
      %p252 = scmp.le.s32.totalorder 1, %s18
      %p253 = scmp.lt.s32.totalorder %s18, 3
      %p254 = pnand %p252, %p253
      %p255 = pneg %p254
      // Predicated region
      $region45: #{tpu_custom_call.1} parent=5 // pred_check
        _
      $region46: #{tpu_custom_call.1} parent=5 // pred_check_branch
        %257 = sbr.rel (%p254) target = $region48
      $region47: #{tpu_custom_call.1} parent=5 // pred_region
        %s258 = ssub.s32 %s18, 1
        // Predicated region
        $region49: #{tpu_custom_call.1} parent=47 // pred_check
          %p259 = pneg %p107
        $region50: #{tpu_custom_call.1} parent=47 // pred_check_branch
          %261 = sbr.rel (%p259) target = $region52
        $region51: #{tpu_custom_call.1} parent=47 // pred_region
          %262 = dma.done [#allocation4], 16384
        $region52: #{tpu_custom_call.1} parent=47 // pred_fallthru
          _
        %s263 = smul.u32 32, %s23
        %p264 = scmp.lt.s32.totalorder %s263, 63
        %s265 = scalar_select %p264, %s263, 63
        %s266 = smul.addr %s265, 4
        %s267 = scalar_lea.vmem %s0, %s266
        %p268 = pneg %p44
        %p269 = pneg %p41
        %p270 = pneg %p65
        %p271 = pneg %p62
        %p272 = pneg %p86
        %p273 = pneg %p83
        %p274 = pneg %p107
        %p275 = pneg %p104
        %p276 = pneg %p128
        %p277 = pneg %p125
        %p278 = pneg %p149
        %p279 = pneg %p146
        %p280 = pneg %p170
        %p281 = pneg %p167
        %p282 = pneg %p196
        %p283 = pneg %p193
        %s284 = sand.u32 %s183, 1
        %s285 = scalar_lea.sflag [#allocation5], %s284
        %s286 = sand.u32 %s183, 1
        %s287 = smul.addr %s286, 2
        %s288 = scalar_lea.vmem [#allocation6], %s287
        %s289 = smul.u32 32, %s23
        %p290 = scmp.lt.s32.totalorder %s289, 63
        %s291 = scalar_select %p290, %s289, 63
        %s292 = smul.addr %s291, 4
        %s293 = scalar_lea.vmem %s0, %s292
        %s294 = smul.u32 32, %s23
        %s295 = smul.u32 2, %s23
        %v297 = vld [vmem:[%s293] sm:$0xf]
        %v298 = vld [vmem:[%s293 + $0x4] sm:$0xf]
        %v299 = vld [vmem:[%s293 + $0x8] sm:$0xf]
        %v300 = vld [vmem:[%s293 + $0xc] sm:$0xf]
        %v301 = vld [vmem:[%s293 + $0x10] sm:$0xf]
        %v302 = vld [vmem:[%s293 + $0x14] sm:$0xf]
        %v303 = vld [vmem:[%s293 + $0x18] sm:$0xf]
        %v304 = vld [vmem:[%s293 + $0x1c] sm:$0xf]
        %v305 = vld [vmem:[%s293 + $0x20] sm:$0xf]
        %v306 = vld [vmem:[%s293 + $0x24] sm:$0xf]
        %v307 = vld [vmem:[%s293 + $0x28] sm:$0xf]
        %v308 = vld [vmem:[%s293 + $0x2c] sm:$0xf]
        %v309 = vld [vmem:[%s293 + $0x30] sm:$0xf]
        %v310 = vld [vmem:[%s293 + $0x34] sm:$0xf]
        %v311 = vld [vmem:[%s293 + $0x38] sm:$0xf]
        %v312 = vld [vmem:[%s293 + $0x3c] sm:$0xf]
        %v313 = vld [vmem:[%s293 + $0x40] sm:$0xf]
        %v314 = vld [vmem:[%s293 + $0x44] sm:$0xf]
        %v315 = vld [vmem:[%s293 + $0x48] sm:$0xf]
        %v316 = vld [vmem:[%s293 + $0x4c] sm:$0xf]
        %v317 = vld [vmem:[%s293 + $0x50] sm:$0xf]
        %v318 = vld [vmem:[%s293 + $0x54] sm:$0xf]
        %v319 = vld [vmem:[%s293 + $0x58] sm:$0xf]
        %v320 = vld [vmem:[%s293 + $0x5c] sm:$0xf]
        %v321 = vld [vmem:[%s293 + $0x60] sm:$0xf]
        %v322 = vld [vmem:[%s293 + $0x64] sm:$0xf]
        %v323 = vld [vmem:[%s293 + $0x68] sm:$0xf]
        %v324 = vld [vmem:[%s293 + $0x6c] sm:$0xf]
        %v325 = vld [vmem:[%s293 + $0x70] sm:$0xf]
        %v326 = vld [vmem:[%s293 + $0x74] sm:$0xf]
        %v327 = vld [vmem:[%s293 + $0x78] sm:$0xf]
        %v328 = vld [vmem:[%s293 + $0x7c] sm:$0xf]
        %v329 = vld [vmem:[%s1] sm:$0xff]
        %v330 = vld [vmem:[%s1 + $0x8] sm:$0xff]
        %v331 = vld [vmem:[%s1 + $0x10] sm:$0xff]
        %v332 = vld [vmem:[%s1 + $0x18] sm:$0xff]
        %v333 = vld [vmem:[%s1 + $0x20] sm:$0xff]
        %v334 = vld [vmem:[%s1 + $0x28] sm:$0xff]
        %v335 = vld [vmem:[%s1 + $0x30] sm:$0xff]
        %v336 = vld [vmem:[%s1 + $0x38] sm:$0xff]
        %v337 = vld [vmem:[%s1 + $0x40] sm:$0x33]
        %v338 = vld [vmem:[%s1 + $0x48] sm:$0x33]
        %v339 = vld [vmem:[%s2] sm:$0xf]
        %v341 = vlaneseq
        %v342 = vshrl.u32 %v341, 7
        %v343 = vsub.s32 0, %v342
        %v344 = vrot.slane %v339, %v343
        %v345 = vlaneseq
        %v346 = vshrl.u32 %v345, 7
        %v347 = vsub.s32 1, %v346
        %v348 = vrot.slane %v339, %v347
        %v349 = vlaneseq
        %v350 = vshrl.u32 %v349, 7
        %v351 = vsub.s32 2, %v350
        %v352 = vrot.slane %v339, %v351
        %v353 = vlaneseq
        %v354 = vshrl.u32 %v353, 7
        %v355 = vsub.s32 3, %v354
        %v356 = vrot.slane %v339, %v355
        %v393 = vunpack.c.l.b16 %v297
        %v394 = vunpack.c.l.b16 %v298
        %v395 = vunpack.c.l.b16 %v299
        %v396 = vunpack.c.l.b16 %v300
        %v397 = vunpack.c.l.b16 %v301
        %v398 = vunpack.c.l.b16 %v302
        %v399 = vunpack.c.l.b16 %v303
        %v400 = vunpack.c.l.b16 %v304
        %v401 = vunpack.c.l.b16 %v305
        %v402 = vunpack.c.l.b16 %v306
        %v403 = vunpack.c.l.b16 %v307
        %v404 = vunpack.c.l.b16 %v308
        %v405 = vunpack.c.l.b16 %v309
        %v406 = vunpack.c.l.b16 %v310
        %v407 = vunpack.c.l.b16 %v311
        %v408 = vunpack.c.l.b16 %v312
        %v409 = vunpack.c.l.b16 %v313
        %v410 = vunpack.c.l.b16 %v314
        %v411 = vunpack.c.l.b16 %v315
        %v412 = vunpack.c.l.b16 %v316
        %v413 = vunpack.c.l.b16 %v317
        %v414 = vunpack.c.l.b16 %v318
        %v415 = vunpack.c.l.b16 %v319
        %v416 = vunpack.c.l.b16 %v320
        %v417 = vunpack.c.l.b16 %v321
        %v418 = vunpack.c.l.b16 %v322
        %v419 = vunpack.c.l.b16 %v323
        %v420 = vunpack.c.l.b16 %v324
        %v421 = vunpack.c.l.b16 %v325
        %v422 = vunpack.c.l.b16 %v326
        %v423 = vunpack.c.l.b16 %v327
        %v424 = vunpack.c.l.b16 %v328
        %v425 = vpack.c.b16 %v394, %v393
        %v426 = vpack.c.b16 %v396, %v395
        %v427 = vpack.c.b16 %v398, %v397
        %v428 = vpack.c.b16 %v400, %v399
        %v429 = vpack.c.b16 %v402, %v401
        %v430 = vpack.c.b16 %v404, %v403
        %v431 = vpack.c.b16 %v406, %v405
        %v432 = vpack.c.b16 %v408, %v407
        %v433 = vpack.c.b16 %v410, %v409
        %v434 = vpack.c.b16 %v412, %v411
        %v435 = vpack.c.b16 %v414, %v413
        %v436 = vpack.c.b16 %v416, %v415
        %v437 = vpack.c.b16 %v418, %v417
        %v438 = vpack.c.b16 %v420, %v419
        %v439 = vpack.c.b16 %v422, %v421
        %v440 = vpack.c.b16 %v424, %v423
        %v451 = vunpack.c.l.b16 %v329
        %v452 = vunpack.c.h.b16 %v329
        %v453 = vunpack.c.l.b16 %v330
        %v454 = vunpack.c.h.b16 %v330
        %v455 = vunpack.c.l.b16 %v331
        %v456 = vunpack.c.h.b16 %v331
        %v457 = vunpack.c.l.b16 %v332
        %v458 = vunpack.c.h.b16 %v332
        %v459 = vunpack.c.l.b16 %v333
        %v460 = vunpack.c.h.b16 %v333
        %v461 = vunpack.c.l.b16 %v334
        %v462 = vunpack.c.h.b16 %v334
        %v463 = vunpack.c.l.b16 %v335
        %v464 = vunpack.c.h.b16 %v335
        %v465 = vunpack.c.l.b16 %v336
        %v466 = vunpack.c.h.b16 %v336
        %v467 = vunpack.c.l.b16 %v337
        %v468 = vunpack.c.h.b16 %v337
        %v469 = vunpack.c.l.b16 %v338
        %v470 = vunpack.c.h.b16 %v338
        %v471 = vpack.c.b16 %v455, %v451
        %v472 = vpack.c.b16 %v456, %v452
        %v473 = vpack.c.b16 %v457, %v453
        %v474 = vpack.c.b16 %v458, %v454
        %v475 = vpack.c.b16 %v463, %v459
        %v476 = vpack.c.b16 %v464, %v460
        %v477 = vpack.c.b16 %v465, %v461
        %v478 = vpack.c.b16 %v466, %v462
        %v479 = vpack.c.b16 %v467, %v467
        %v480 = vpack.c.b16 %v468, %v468
        %v481 = vpack.c.b16 %v469, %v469
        %v482 = vpack.c.b16 %v470, %v470
        %vm491 = vcmask 293888
        %v493 = vsel %vm491, %v425, 0
        %v496 = vsel %vm491, %v426, 0
        %v499 = vsel %vm491, %v427, 0
        %v502 = vsel %vm491, %v428, 0
        %v505 = vsel %vm491, %v429, 0
        %v508 = vsel %vm491, %v430, 0
        %v511 = vsel %vm491, %v431, 0
        %v514 = vsel %vm491, %v432, 0
        %v517 = vsel %vm491, %v433, 0
        %v520 = vsel %vm491, %v434, 0
        %v523 = vsel %vm491, %v435, 0
        %v526 = vsel %vm491, %v436, 0
        %v529 = vsel %vm491, %v437, 0
        %v532 = vsel %vm491, %v438, 0
        %v535 = vsel %vm491, %v439, 0
        %v538 = vsel %vm491, %v440, 0
        %vm540 = vcmask 1041408
        %v542 = vsel %vm540, %v479, 0
        %v545 = vsel %vm540, %v480, 0
        %v548 = vsel %vm540, %v481, 0
        %v551 = vsel %vm540, %v482, 0
        %553 = vmatprep.subr.bf16.mxu0 %v472
        %554 = vmatpush1.bf16.msra.mxu0 %v471
        %555 = vmatprep.subr.bf16.mxu0 %v476
        %556 = vmatpush1.bf16.msra.mxu0 %v475
        %557 = vmatprep.subr.bf16.mxu0 %v545
        %558 = vmatpush1.bf16.msra.mxu0 %v542
        %559 = vmatprep.subr.bf16.mxu0 0
        %560 = vmatpush1.bf16.msra.mxu0 0
        %561 = vmatprep.subr.bf16.mxu0 0
        %562 = vmatpush1.bf16.msra.mxu0 0
        %563 = vmatprep.subr.bf16.mxu0 0
        %564 = vmatpush1.bf16.msra.mxu0 0
        %565 = vmatprep.subr.bf16.mxu0 0
        %566 = vmatpush1.bf16.msra.mxu0 0
        %567 = vmatprep.subr.bf16.mxu0 0
        %568 = vmatpush1.bf16.msra.mxu0 0
        %569 = vmatprep.subr.bf16.mxu0 0
        %570 = vmatpush1.bf16.msra.mxu0 0
        %571 = vmatprep.subr.bf16.mxu0 0
        %572 = vmatpush1.bf16.msra.mxu0 0
        %573 = vmatprep.subr.bf16.mxu0 0
        %574 = vmatpush1.bf16.msra.mxu0 0
        %575 = vmatprep.subr.bf16.mxu0 0
        %576 = vmatpush1.bf16.msra.mxu0 0
        %577 = vmatprep.subr.bf16.mxu0 0
        %578 = vmatpush1.bf16.msra.mxu0 0
        %579 = vmatprep.subr.bf16.mxu0 0
        %580 = vmatpush1.bf16.msra.mxu0 0
        %581 = vmatprep.subr.bf16.mxu0 0
        %582 = vmatpush1.bf16.msra.mxu0 0
        %583 = vmatprep.subr.bf16.mxu0 0
        %584 = vmatpush1.bf16.msra.mxu0 0
        %585 = vmatprep.mubr.bf16.mxu0 0
        %586 = vmatmul.mubr.bf16.gmra.mrb[0].mxu0 %v493
        %v587 = vpop.f32.mrb[0].mxu0
        %v588 = vadd.f32 %v344, %v587
        %v589 = vpop.f32.mrb[0].mxu0
        %v590 = vadd.f32 %v348, %v589
        %v591 = vpop.f32.mrb[0].mxu0
        %v592 = vadd.f32 %v344, %v591
        %v593 = vpop.f32.mrb[0].mxu0
        %v594 = vadd.f32 %v348, %v593
        %595 = vmatprep.mubr.bf16.mxu0 0
        %596 = vmatmul.mubr.bf16.gmra.mrb[0].mxu0 %v496
        %v597 = vpop.f32.mrb[0].mxu0
        %v598 = vadd.f32 %v344, %v597
        %v599 = vpop.f32.mrb[0].mxu0
        %v600 = vadd.f32 %v348, %v599
        %v601 = vpop.f32.mrb[0].mxu0
        %v602 = vadd.f32 %v344, %v601
        %v603 = vpop.f32.mrb[0].mxu0
        %v604 = vadd.f32 %v348, %v603
        %605 = vmatprep.mubr.bf16.mxu0 0
        %606 = vmatmul.mubr.bf16.gmra.mrb[0].mxu0 %v499
        %v607 = vpop.f32.mrb[0].mxu0
        %v608 = vadd.f32 %v344, %v607
        %v609 = vpop.f32.mrb[0].mxu0
        %v610 = vadd.f32 %v348, %v609
        %v611 = vpop.f32.mrb[0].mxu0
        %v612 = vadd.f32 %v344, %v611
        %v613 = vpop.f32.mrb[0].mxu0
        %v614 = vadd.f32 %v348, %v613
        %615 = vmatprep.mubr.bf16.mxu0 0
        %616 = vmatmul.mubr.bf16.gmra.mrb[0].mxu0 %v502
        %v617 = vpop.f32.mrb[0].mxu0
        %v618 = vadd.f32 %v344, %v617
        %v619 = vpop.f32.mrb[0].mxu0
        %v620 = vadd.f32 %v348, %v619
        %v621 = vpop.f32.mrb[0].mxu0
        %v622 = vadd.f32 %v344, %v621
        %v623 = vpop.f32.mrb[0].mxu0
        %v624 = vadd.f32 %v348, %v623
        %625 = vmatprep.mubr.bf16.mxu0 0
        %626 = vmatmul.mubr.bf16.gmra.mrb[0].mxu0 %v505
        %v627 = vpop.f32.mrb[0].mxu0
        %v628 = vadd.f32 %v344, %v627
        %v629 = vpop.f32.mrb[0].mxu0
        %v630 = vadd.f32 %v348, %v629
        %v631 = vpop.f32.mrb[0].mxu0
        %v632 = vadd.f32 %v344, %v631
        %v633 = vpop.f32.mrb[0].mxu0
        %v634 = vadd.f32 %v348, %v633
        %635 = vmatprep.mubr.bf16.mxu0 0
        %636 = vmatmul.mubr.bf16.gmra.mrb[0].mxu0 %v508
        %v637 = vpop.f32.mrb[0].mxu0
        %v638 = vadd.f32 %v344, %v637
        %v639 = vpop.f32.mrb[0].mxu0
        %v640 = vadd.f32 %v348, %v639
        %v641 = vpop.f32.mrb[0].mxu0
        %v642 = vadd.f32 %v344, %v641
        %v643 = vpop.f32.mrb[0].mxu0
        %v644 = vadd.f32 %v348, %v643
        %645 = vmatprep.mubr.bf16.mxu0 0
        %646 = vmatmul.mubr.bf16.gmra.mrb[0].mxu0 %v511
        %v647 = vpop.f32.mrb[0].mxu0
        %v648 = vadd.f32 %v344, %v647
        %v649 = vpop.f32.mrb[0].mxu0
        %v650 = vadd.f32 %v348, %v649
        %v651 = vpop.f32.mrb[0].mxu0
        %v652 = vadd.f32 %v344, %v651
        %v653 = vpop.f32.mrb[0].mxu0
        %v654 = vadd.f32 %v348, %v653
        %655 = vmatprep.mubr.bf16.mxu0 0
        %656 = vmatmul.mubr.bf16.gmra.mrb[0].mxu0 %v514
        %v657 = vpop.f32.mrb[0].mxu0
        %v658 = vadd.f32 %v344, %v657
        %v659 = vpop.f32.mrb[0].mxu0
        %v660 = vadd.f32 %v348, %v659
        %v661 = vpop.f32.mrb[0].mxu0
        %v662 = vadd.f32 %v344, %v661
        %v663 = vpop.f32.mrb[0].mxu0
        %v664 = vadd.f32 %v348, %v663
        %665 = vmatprep.mubr.bf16.mxu0 0
        %666 = vmatmul.mubr.bf16.gmra.mrb[0].mxu0 %v517
        %v667 = vpop.f32.mrb[0].mxu0
        %v668 = vadd.f32 %v344, %v667
        %v669 = vpop.f32.mrb[0].mxu0
        %v670 = vadd.f32 %v348, %v669
        %v671 = vpop.f32.mrb[0].mxu0
        %v672 = vadd.f32 %v344, %v671
        %v673 = vpop.f32.mrb[0].mxu0
        %v674 = vadd.f32 %v348, %v673
        %675 = vmatprep.mubr.bf16.mxu0 0
        %676 = vmatmul.mubr.bf16.gmra.mrb[0].mxu0 %v520
        %v677 = vpop.f32.mrb[0].mxu0
        %v678 = vadd.f32 %v344, %v677
        %v679 = vpop.f32.mrb[0].mxu0
        %v680 = vadd.f32 %v348, %v679
        %v681 = vpop.f32.mrb[0].mxu0
        %v682 = vadd.f32 %v344, %v681
        %v683 = vpop.f32.mrb[0].mxu0
        %v684 = vadd.f32 %v348, %v683
        %685 = vmatprep.mubr.bf16.mxu0 0
        %686 = vmatmul.mubr.bf16.gmra.mrb[0].mxu0 %v523
        %v687 = vpop.f32.mrb[0].mxu0
        %v688 = vadd.f32 %v344, %v687
        %v689 = vpop.f32.mrb[0].mxu0
        %v690 = vadd.f32 %v348, %v689
        %v691 = vpop.f32.mrb[0].mxu0
        %v692 = vadd.f32 %v344, %v691
        %v693 = vpop.f32.mrb[0].mxu0
        %v694 = vadd.f32 %v348, %v693
        %695 = vmatprep.mubr.bf16.mxu0 0
        %696 = vmatmul.mubr.bf16.gmra.mrb[0].mxu0 %v526
        %v697 = vpop.f32.mrb[0].mxu0
        %v698 = vadd.f32 %v344, %v697
        %v699 = vpop.f32.mrb[0].mxu0
        %v700 = vadd.f32 %v348, %v699
        %v701 = vpop.f32.mrb[0].mxu0
        %v702 = vadd.f32 %v344, %v701
        %v703 = vpop.f32.mrb[0].mxu0
        %v704 = vadd.f32 %v348, %v703
        %705 = vmatprep.mubr.bf16.mxu0 0
        %706 = vmatmul.mubr.bf16.gmra.mrb[0].mxu0 %v529
        %v707 = vpop.f32.mrb[0].mxu0
        %v708 = vadd.f32 %v344, %v707
        %v709 = vpop.f32.mrb[0].mxu0
        %v710 = vadd.f32 %v348, %v709
        %v711 = vpop.f32.mrb[0].mxu0
        %v712 = vadd.f32 %v344, %v711
        %v713 = vpop.f32.mrb[0].mxu0
        %v714 = vadd.f32 %v348, %v713
        %715 = vmatprep.mubr.bf16.mxu0 0
        %716 = vmatmul.mubr.bf16.gmra.mrb[0].mxu0 %v532
        %v717 = vpop.f32.mrb[0].mxu0
        %v718 = vadd.f32 %v344, %v717
        %v719 = vpop.f32.mrb[0].mxu0
        %v720 = vadd.f32 %v348, %v719
        %v721 = vpop.f32.mrb[0].mxu0
        %v722 = vadd.f32 %v344, %v721
        %v723 = vpop.f32.mrb[0].mxu0
        %v724 = vadd.f32 %v348, %v723
        %725 = vmatprep.mubr.bf16.mxu0 0
        %726 = vmatmul.mubr.bf16.gmra.mrb[0].mxu0 %v535
        %v727 = vpop.f32.mrb[0].mxu0
        %v728 = vadd.f32 %v344, %v727
        %v729 = vpop.f32.mrb[0].mxu0
        %v730 = vadd.f32 %v348, %v729
        %v731 = vpop.f32.mrb[0].mxu0
        %v732 = vadd.f32 %v344, %v731
        %v733 = vpop.f32.mrb[0].mxu0
        %v734 = vadd.f32 %v348, %v733
        %735 = vmatprep.mubr.bf16.mxu0 0
        %736 = vmatmul.mubr.bf16.gmra.mrb[0].mxu0 %v538
        %v737 = vpop.f32.mrb[0].mxu0
        %v738 = vadd.f32 %v344, %v737
        %v739 = vpop.f32.mrb[0].mxu0
        %v740 = vadd.f32 %v348, %v739
        %v741 = vpop.f32.mrb[0].mxu0
        %v742 = vadd.f32 %v344, %v741
        %v743 = vpop.f32.mrb[0].mxu0
        %v744 = vadd.f32 %v348, %v743
        %745 = vdwg.mxu0
        %746 = vmatprep.subr.bf16.mxu0 %v474
        %747 = vmatpush1.bf16.msra.mxu0 %v473
        %748 = vmatprep.subr.bf16.mxu0 %v478
        %749 = vmatpush1.bf16.msra.mxu0 %v477
        %750 = vmatprep.subr.bf16.mxu0 %v551
        %751 = vmatpush1.bf16.msra.mxu0 %v548
        %752 = vmatprep.subr.bf16.mxu0 0
        %753 = vmatpush1.bf16.msra.mxu0 0
        %754 = vmatprep.subr.bf16.mxu0 0
        %755 = vmatpush1.bf16.msra.mxu0 0
        %756 = vmatprep.subr.bf16.mxu0 0
        %757 = vmatpush1.bf16.msra.mxu0 0
        %758 = vmatprep.subr.bf16.mxu0 0
        %759 = vmatpush1.bf16.msra.mxu0 0
        %760 = vmatprep.subr.bf16.mxu0 0
        %761 = vmatpush1.bf16.msra.mxu0 0
        %762 = vmatprep.subr.bf16.mxu0 0
        %763 = vmatpush1.bf16.msra.mxu0 0
        %764 = vmatprep.subr.bf16.mxu0 0
        %765 = vmatpush1.bf16.msra.mxu0 0
        %766 = vmatprep.subr.bf16.mxu0 0
        %767 = vmatpush1.bf16.msra.mxu0 0
        %768 = vmatprep.subr.bf16.mxu0 0
        %769 = vmatpush1.bf16.msra.mxu0 0
        %770 = vmatprep.subr.bf16.mxu0 0
        %771 = vmatpush1.bf16.msra.mxu0 0
        %772 = vmatprep.subr.bf16.mxu0 0
        %773 = vmatpush1.bf16.msra.mxu0 0
        %774 = vmatprep.subr.bf16.mxu0 0
        %775 = vmatpush1.bf16.msra.mxu0 0
        %776 = vmatprep.subr.bf16.mxu0 0
        %777 = vmatpush1.bf16.msra.mxu0 0
        %778 = vmatprep.mubr.bf16.mxu0 0
        %779 = vmatmul.mubr.bf16.gmra.mrb[0].mxu0 %v493
        %v780 = vpop.f32.mrb[0].mxu0
        %v781 = vadd.f32 %v352, %v780
        %v782 = vpop.f32.mrb[0].mxu0
        %v783 = vadd.f32 %v356, %v782
        %v784 = vpop.f32.mrb[0].mxu0
        %v785 = vadd.f32 %v352, %v784
        %v786 = vpop.f32.mrb[0].mxu0
        %v787 = vadd.f32 %v356, %v786
        %788 = vmatprep.mubr.bf16.mxu0 0
        %789 = vmatmul.mubr.bf16.gmra.mrb[0].mxu0 %v496
        %v790 = vpop.f32.mrb[0].mxu0
        %v791 = vadd.f32 %v352, %v790
        %v792 = vpop.f32.mrb[0].mxu0
        %v793 = vadd.f32 %v356, %v792
        %v794 = vpop.f32.mrb[0].mxu0
        %v795 = vadd.f32 %v352, %v794
        %v796 = vpop.f32.mrb[0].mxu0
        %v797 = vadd.f32 %v356, %v796
        %798 = vmatprep.mubr.bf16.mxu0 0
        %799 = vmatmul.mubr.bf16.gmra.mrb[0].mxu0 %v499
        %v800 = vpop.f32.mrb[0].mxu0
        %v801 = vadd.f32 %v352, %v800
        %v802 = vpop.f32.mrb[0].mxu0
        %v803 = vadd.f32 %v356, %v802
        %v804 = vpop.f32.mrb[0].mxu0
        %v805 = vadd.f32 %v352, %v804
        %v806 = vpop.f32.mrb[0].mxu0
        %v807 = vadd.f32 %v356, %v806
        %808 = vmatprep.mubr.bf16.mxu0 0
        %809 = vmatmul.mubr.bf16.gmra.mrb[0].mxu0 %v502
        %v810 = vpop.f32.mrb[0].mxu0
        %v811 = vadd.f32 %v352, %v810
        %v812 = vpop.f32.mrb[0].mxu0
        %v813 = vadd.f32 %v356, %v812
        %v814 = vpop.f32.mrb[0].mxu0
        %v815 = vadd.f32 %v352, %v814
        %v816 = vpop.f32.mrb[0].mxu0
        %v817 = vadd.f32 %v356, %v816
        %818 = vmatprep.mubr.bf16.mxu0 0
        %819 = vmatmul.mubr.bf16.gmra.mrb[0].mxu0 %v505
        %v820 = vpop.f32.mrb[0].mxu0
        %v821 = vadd.f32 %v352, %v820
        %v822 = vpop.f32.mrb[0].mxu0
        %v823 = vadd.f32 %v356, %v822
        %v824 = vpop.f32.mrb[0].mxu0
        %v825 = vadd.f32 %v352, %v824
        %v826 = vpop.f32.mrb[0].mxu0
        %v827 = vadd.f32 %v356, %v826
        %828 = vmatprep.mubr.bf16.mxu0 0
        %829 = vmatmul.mubr.bf16.gmra.mrb[0].mxu0 %v508
        %v830 = vpop.f32.mrb[0].mxu0
        %v831 = vadd.f32 %v352, %v830
        %v832 = vpop.f32.mrb[0].mxu0
        %v833 = vadd.f32 %v356, %v832
        %v834 = vpop.f32.mrb[0].mxu0
        %v835 = vadd.f32 %v352, %v834
        %v836 = vpop.f32.mrb[0].mxu0
        %v837 = vadd.f32 %v356, %v836
        %838 = vmatprep.mubr.bf16.mxu0 0
        %839 = vmatmul.mubr.bf16.gmra.mrb[0].mxu0 %v511
        %v840 = vpop.f32.mrb[0].mxu0
        %v841 = vadd.f32 %v352, %v840
        %v842 = vpop.f32.mrb[0].mxu0
        %v843 = vadd.f32 %v356, %v842
        %v844 = vpop.f32.mrb[0].mxu0
        %v845 = vadd.f32 %v352, %v844
        %v846 = vpop.f32.mrb[0].mxu0
        %v847 = vadd.f32 %v356, %v846
        %848 = vmatprep.mubr.bf16.mxu0 0
        %849 = vmatmul.mubr.bf16.gmra.mrb[0].mxu0 %v514
        %v850 = vpop.f32.mrb[0].mxu0
        %v851 = vadd.f32 %v352, %v850
        %v852 = vpop.f32.mrb[0].mxu0
        %v853 = vadd.f32 %v356, %v852
        %v854 = vpop.f32.mrb[0].mxu0
        %v855 = vadd.f32 %v352, %v854
        %v856 = vpop.f32.mrb[0].mxu0
        %v857 = vadd.f32 %v356, %v856
        %858 = vmatprep.mubr.bf16.mxu0 0
        %859 = vmatmul.mubr.bf16.gmra.mrb[0].mxu0 %v517
        %v860 = vpop.f32.mrb[0].mxu0
        %v861 = vadd.f32 %v352, %v860
        %v862 = vpop.f32.mrb[0].mxu0
        %v863 = vadd.f32 %v356, %v862
        %v864 = vpop.f32.mrb[0].mxu0
        %v865 = vadd.f32 %v352, %v864
        %v866 = vpop.f32.mrb[0].mxu0
        %v867 = vadd.f32 %v356, %v866
        %868 = vmatprep.mubr.bf16.mxu0 0
        %869 = vmatmul.mubr.bf16.gmra.mrb[0].mxu0 %v520
        %v870 = vpop.f32.mrb[0].mxu0
        %v871 = vadd.f32 %v352, %v870
        %v872 = vpop.f32.mrb[0].mxu0
        %v873 = vadd.f32 %v356, %v872
        %v874 = vpop.f32.mrb[0].mxu0
        %v875 = vadd.f32 %v352, %v874
        %v876 = vpop.f32.mrb[0].mxu0
        %v877 = vadd.f32 %v356, %v876
        %878 = vmatprep.mubr.bf16.mxu0 0
        %879 = vmatmul.mubr.bf16.gmra.mrb[0].mxu0 %v523
        %v880 = vpop.f32.mrb[0].mxu0
        %v881 = vadd.f32 %v352, %v880
        %v882 = vpop.f32.mrb[0].mxu0
        %v883 = vadd.f32 %v356, %v882
        %v884 = vpop.f32.mrb[0].mxu0
        %v885 = vadd.f32 %v352, %v884
        %v886 = vpop.f32.mrb[0].mxu0
        %v887 = vadd.f32 %v356, %v886
        %888 = vmatprep.mubr.bf16.mxu0 0
        %889 = vmatmul.mubr.bf16.gmra.mrb[0].mxu0 %v526
        %v890 = vpop.f32.mrb[0].mxu0
        %v891 = vadd.f32 %v352, %v890
        %v892 = vpop.f32.mrb[0].mxu0
        %v893 = vadd.f32 %v356, %v892
        %v894 = vpop.f32.mrb[0].mxu0
        %v895 = vadd.f32 %v352, %v894
        %v896 = vpop.f32.mrb[0].mxu0
        %v897 = vadd.f32 %v356, %v896
        %898 = vmatprep.mubr.bf16.mxu0 0
        %899 = vmatmul.mubr.bf16.gmra.mrb[0].mxu0 %v529
        %v900 = vpop.f32.mrb[0].mxu0
        %v901 = vadd.f32 %v352, %v900
        %v902 = vpop.f32.mrb[0].mxu0
        %v903 = vadd.f32 %v356, %v902
        %v904 = vpop.f32.mrb[0].mxu0
        %v905 = vadd.f32 %v352, %v904
        %v906 = vpop.f32.mrb[0].mxu0
        %v907 = vadd.f32 %v356, %v906
        %908 = vmatprep.mubr.bf16.mxu0 0
        %909 = vmatmul.mubr.bf16.gmra.mrb[0].mxu0 %v532
        %v910 = vpop.f32.mrb[0].mxu0
        %v911 = vadd.f32 %v352, %v910
        %v912 = vpop.f32.mrb[0].mxu0
        %v913 = vadd.f32 %v356, %v912
        %v914 = vpop.f32.mrb[0].mxu0
        %v915 = vadd.f32 %v352, %v914
        %v916 = vpop.f32.mrb[0].mxu0
        %v917 = vadd.f32 %v356, %v916
        %918 = vmatprep.mubr.bf16.mxu0 0
        %919 = vmatmul.mubr.bf16.gmra.mrb[0].mxu0 %v535
        %v920 = vpop.f32.mrb[0].mxu0
        %v921 = vadd.f32 %v352, %v920
        %v922 = vpop.f32.mrb[0].mxu0
        %v923 = vadd.f32 %v356, %v922
        %v924 = vpop.f32.mrb[0].mxu0
        %v925 = vadd.f32 %v352, %v924
        %v926 = vpop.f32.mrb[0].mxu0
        %v927 = vadd.f32 %v356, %v926
        %928 = vmatprep.mubr.bf16.mxu0 0
        %929 = vmatmul.mubr.bf16.gmra.mrb[0].mxu0 %v538
        %v930 = vpop.f32.mrb[0].mxu0
        %v931 = vadd.f32 %v352, %v930
        %v932 = vpop.f32.mrb[0].mxu0
        %v933 = vadd.f32 %v356, %v932
        %v934 = vpop.f32.mrb[0].mxu0
        %v935 = vadd.f32 %v352, %v934
        %v936 = vpop.f32.mrb[0].mxu0
        %v937 = vadd.f32 %v356, %v936
        %938 = vdwg.mxu0
        %v939 = vmax.f32 %v588, 0.0
        %v940 = vmax.f32 %v590, 0.0
        %v941 = vmax.f32 %v781, 0.0
        %v942 = vmax.f32 %v783, 0.0
        %v943 = vmax.f32 %v592, 0.0
        %v944 = vmax.f32 %v594, 0.0
        %v945 = vmax.f32 %v785, 0.0
        %v946 = vmax.f32 %v787, 0.0
        %v947 = vmax.f32 %v598, 0.0
        %v948 = vmax.f32 %v600, 0.0
        %v949 = vmax.f32 %v791, 0.0
        %v950 = vmax.f32 %v793, 0.0
        %v951 = vmax.f32 %v602, 0.0
        %v952 = vmax.f32 %v604, 0.0
        %v953 = vmax.f32 %v795, 0.0
        %v954 = vmax.f32 %v797, 0.0
        %v955 = vmax.f32 %v608, 0.0
        %v956 = vmax.f32 %v610, 0.0
        %v957 = vmax.f32 %v801, 0.0
        %v958 = vmax.f32 %v803, 0.0
        %v959 = vmax.f32 %v612, 0.0
        %v960 = vmax.f32 %v614, 0.0
        %v961 = vmax.f32 %v805, 0.0
        %v962 = vmax.f32 %v807, 0.0
        %v963 = vmax.f32 %v618, 0.0
        %v964 = vmax.f32 %v620, 0.0
        %v965 = vmax.f32 %v811, 0.0
        %v966 = vmax.f32 %v813, 0.0
        %v967 = vmax.f32 %v622, 0.0
        %v968 = vmax.f32 %v624, 0.0
        %v969 = vmax.f32 %v815, 0.0
        %v970 = vmax.f32 %v817, 0.0
        %v971 = vmax.f32 %v628, 0.0
        %v972 = vmax.f32 %v630, 0.0
        %v973 = vmax.f32 %v821, 0.0
        %v974 = vmax.f32 %v823, 0.0
        %v975 = vmax.f32 %v632, 0.0
        %v976 = vmax.f32 %v634, 0.0
        %v977 = vmax.f32 %v825, 0.0
        %v978 = vmax.f32 %v827, 0.0
        %v979 = vmax.f32 %v638, 0.0
        %v980 = vmax.f32 %v640, 0.0
        %v981 = vmax.f32 %v831, 0.0
        %v982 = vmax.f32 %v833, 0.0
        %v983 = vmax.f32 %v642, 0.0
        %v984 = vmax.f32 %v644, 0.0
        %v985 = vmax.f32 %v835, 0.0
        %v986 = vmax.f32 %v837, 0.0
        %v987 = vmax.f32 %v648, 0.0
        %v988 = vmax.f32 %v650, 0.0
        %v989 = vmax.f32 %v841, 0.0
        %v990 = vmax.f32 %v843, 0.0
        %v991 = vmax.f32 %v652, 0.0
        %v992 = vmax.f32 %v654, 0.0
        %v993 = vmax.f32 %v845, 0.0
        %v994 = vmax.f32 %v847, 0.0
        %v995 = vmax.f32 %v658, 0.0
        %v996 = vmax.f32 %v660, 0.0
        %v997 = vmax.f32 %v851, 0.0
        %v998 = vmax.f32 %v853, 0.0
        %v999 = vmax.f32 %v662, 0.0
        %v1000 = vmax.f32 %v664, 0.0
        %v1001 = vmax.f32 %v855, 0.0
        %v1002 = vmax.f32 %v857, 0.0
        %v1003 = vmax.f32 %v668, 0.0
        %v1004 = vmax.f32 %v670, 0.0
        %v1005 = vmax.f32 %v861, 0.0
        %v1006 = vmax.f32 %v863, 0.0
        %v1007 = vmax.f32 %v672, 0.0
        %v1008 = vmax.f32 %v674, 0.0
        %v1009 = vmax.f32 %v865, 0.0
        %v1010 = vmax.f32 %v867, 0.0
        %v1011 = vmax.f32 %v678, 0.0
        %v1012 = vmax.f32 %v680, 0.0
        %v1013 = vmax.f32 %v871, 0.0
        %v1014 = vmax.f32 %v873, 0.0
        %v1015 = vmax.f32 %v682, 0.0
        %v1016 = vmax.f32 %v684, 0.0
        %v1017 = vmax.f32 %v875, 0.0
        %v1018 = vmax.f32 %v877, 0.0
        %v1019 = vmax.f32 %v688, 0.0
        %v1020 = vmax.f32 %v690, 0.0
        %v1021 = vmax.f32 %v881, 0.0
        %v1022 = vmax.f32 %v883, 0.0
        %v1023 = vmax.f32 %v692, 0.0
        %v1024 = vmax.f32 %v694, 0.0
        %v1025 = vmax.f32 %v885, 0.0
        %v1026 = vmax.f32 %v887, 0.0
        %v1027 = vmax.f32 %v698, 0.0
        %v1028 = vmax.f32 %v700, 0.0
        %v1029 = vmax.f32 %v891, 0.0
        %v1030 = vmax.f32 %v893, 0.0
        %v1031 = vmax.f32 %v702, 0.0
        %v1032 = vmax.f32 %v704, 0.0
        %v1033 = vmax.f32 %v895, 0.0
        %v1034 = vmax.f32 %v897, 0.0
        %v1035 = vmax.f32 %v708, 0.0
        %v1036 = vmax.f32 %v710, 0.0
        %v1037 = vmax.f32 %v901, 0.0
        %v1038 = vmax.f32 %v903, 0.0
        %v1039 = vmax.f32 %v712, 0.0
        %v1040 = vmax.f32 %v714, 0.0
        %v1041 = vmax.f32 %v905, 0.0
        %v1042 = vmax.f32 %v907, 0.0
        %v1043 = vmax.f32 %v718, 0.0
        %v1044 = vmax.f32 %v720, 0.0
        %v1045 = vmax.f32 %v911, 0.0
        %v1046 = vmax.f32 %v913, 0.0
        %v1047 = vmax.f32 %v722, 0.0
        %v1048 = vmax.f32 %v724, 0.0
        %v1049 = vmax.f32 %v915, 0.0
        %v1050 = vmax.f32 %v917, 0.0
        %v1051 = vmax.f32 %v728, 0.0
        %v1052 = vmax.f32 %v730, 0.0
        %v1053 = vmax.f32 %v921, 0.0
        %v1054 = vmax.f32 %v923, 0.0
        %v1055 = vmax.f32 %v732, 0.0
        %v1056 = vmax.f32 %v734, 0.0
        %v1057 = vmax.f32 %v925, 0.0
        %v1058 = vmax.f32 %v927, 0.0
        %v1059 = vmax.f32 %v738, 0.0
        %v1060 = vmax.f32 %v740, 0.0
        %v1061 = vmax.f32 %v931, 0.0
        %v1062 = vmax.f32 %v933, 0.0
        %v1063 = vmax.f32 %v742, 0.0
        %v1064 = vmax.f32 %v744, 0.0
        %v1065 = vmax.f32 %v935, 0.0
        %v1066 = vmax.f32 %v937, 0.0
        %v1067 = vpack.c.bf16 %v943, %v939
        %v1068 = vpack.c.bf16 %v944, %v940
        %v1069 = vpack.c.bf16 %v945, %v941
        %v1070 = vpack.c.bf16 %v946, %v942
        %v1071 = vpack.c.bf16 %v951, %v947
        %v1072 = vpack.c.bf16 %v952, %v948
        %v1073 = vpack.c.bf16 %v953, %v949
        %v1074 = vpack.c.bf16 %v954, %v950
        %v1075 = vpack.c.bf16 %v959, %v955
        %v1076 = vpack.c.bf16 %v960, %v956
        %v1077 = vpack.c.bf16 %v961, %v957
        %v1078 = vpack.c.bf16 %v962, %v958
        %v1079 = vpack.c.bf16 %v967, %v963
        %v1080 = vpack.c.bf16 %v968, %v964
        %v1081 = vpack.c.bf16 %v969, %v965
        %v1082 = vpack.c.bf16 %v970, %v966
        %v1083 = vpack.c.bf16 %v975, %v971
        %v1084 = vpack.c.bf16 %v976, %v972
        %v1085 = vpack.c.bf16 %v977, %v973
        %v1086 = vpack.c.bf16 %v978, %v974
        %v1087 = vpack.c.bf16 %v983, %v979
        %v1088 = vpack.c.bf16 %v984, %v980
        %v1089 = vpack.c.bf16 %v985, %v981
        %v1090 = vpack.c.bf16 %v986, %v982
        %v1091 = vpack.c.bf16 %v991, %v987
        %v1092 = vpack.c.bf16 %v992, %v988
        %v1093 = vpack.c.bf16 %v993, %v989
        %v1094 = vpack.c.bf16 %v994, %v990
        %v1095 = vpack.c.bf16 %v999, %v995
        %v1096 = vpack.c.bf16 %v1000, %v996
        %v1097 = vpack.c.bf16 %v1001, %v997
        %v1098 = vpack.c.bf16 %v1002, %v998
        %v1099 = vpack.c.bf16 %v1007, %v1003
        %v1100 = vpack.c.bf16 %v1008, %v1004
        %v1101 = vpack.c.bf16 %v1009, %v1005
        %v1102 = vpack.c.bf16 %v1010, %v1006
        %v1103 = vpack.c.bf16 %v1015, %v1011
        %v1104 = vpack.c.bf16 %v1016, %v1012
        %v1105 = vpack.c.bf16 %v1017, %v1013
        %v1106 = vpack.c.bf16 %v1018, %v1014
        %v1107 = vpack.c.bf16 %v1023, %v1019
        %v1108 = vpack.c.bf16 %v1024, %v1020
        %v1109 = vpack.c.bf16 %v1025, %v1021
        %v1110 = vpack.c.bf16 %v1026, %v1022
        %v1111 = vpack.c.bf16 %v1031, %v1027
        %v1112 = vpack.c.bf16 %v1032, %v1028
        %v1113 = vpack.c.bf16 %v1033, %v1029
        %v1114 = vpack.c.bf16 %v1034, %v1030
        %v1115 = vpack.c.bf16 %v1039, %v1035
        %v1116 = vpack.c.bf16 %v1040, %v1036
        %v1117 = vpack.c.bf16 %v1041, %v1037
        %v1118 = vpack.c.bf16 %v1042, %v1038
        %v1119 = vpack.c.bf16 %v1047, %v1043
        %v1120 = vpack.c.bf16 %v1048, %v1044
        %v1121 = vpack.c.bf16 %v1049, %v1045
        %v1122 = vpack.c.bf16 %v1050, %v1046
        %v1123 = vpack.c.bf16 %v1055, %v1051
        %v1124 = vpack.c.bf16 %v1056, %v1052
        %v1125 = vpack.c.bf16 %v1057, %v1053
        %v1126 = vpack.c.bf16 %v1058, %v1054
        %v1127 = vpack.c.bf16 %v1063, %v1059
        %v1128 = vpack.c.bf16 %v1064, %v1060
        %v1129 = vpack.c.bf16 %v1065, %v1061
        %v1130 = vpack.c.bf16 %v1066, %v1062
        %v1131 = vld [vmem:[#allocation3] sm:$0xff]
        %v1132 = vld [vmem:[#allocation3 + $0x8] sm:$0xff]
        %v1133 = vld [vmem:[#allocation3 + $0x10] sm:$0xff]
        %v1134 = vld [vmem:[#allocation3 + $0x18] sm:$0xff]
        %v1135 = vld [vmem:[#allocation3 + $0x20] sm:$0xff]
        %v1136 = vld [vmem:[#allocation3 + $0x28] sm:$0xff]
        %v1137 = vld [vmem:[#allocation3 + $0x30] sm:$0xff]
        %v1138 = vld [vmem:[#allocation3 + $0x38] sm:$0xff]
        %v1139 = vld [vmem:[#allocation3 + $0x40] sm:$0xff]
        %v1140 = vld [vmem:[#allocation3 + $0x48] sm:$0xff]
        %v1141 = vld [vmem:[#allocation3 + $0x50] sm:$0xff]
        %v1142 = vld [vmem:[#allocation3 + $0x58] sm:$0xff]
        %v1143 = vld [vmem:[#allocation3 + $0x60] sm:$0xff]
        %v1144 = vld [vmem:[#allocation3 + $0x68] sm:$0xff]
        %v1145 = vld [vmem:[#allocation3 + $0x70] sm:$0xff]
        %v1146 = vld [vmem:[#allocation3 + $0x78] sm:$0xff]
        %v1147 = vld [vmem:[#allocation3 + $0x80] sm:$0xff]
        %v1148 = vld [vmem:[#allocation3 + $0x88] sm:$0xff]
        %v1149 = vld [vmem:[#allocation3 + $0x90] sm:$0xff]
        %v1150 = vld [vmem:[#allocation3 + $0x98] sm:$0xff]
        %v1151 = vld [vmem:[#allocation3 + $0xa0] sm:$0xff]
        %v1152 = vld [vmem:[#allocation3 + $0xa8] sm:$0xff]
        %v1153 = vld [vmem:[#allocation3 + $0xb0] sm:$0xff]
        %v1154 = vld [vmem:[#allocation3 + $0xb8] sm:$0xff]
        %v1155 = vld [vmem:[#allocation3 + $0xc0] sm:$0xff]
        %v1156 = vld [vmem:[#allocation3 + $0xc8] sm:$0xff]
        %v1157 = vld [vmem:[#allocation3 + $0xd0] sm:$0xff]
        %v1158 = vld [vmem:[#allocation3 + $0xd8] sm:$0xff]
        %v1159 = vld [vmem:[#allocation3 + $0xe0] sm:$0xff]
        %v1160 = vld [vmem:[#allocation3 + $0xe8] sm:$0xff]
        %v1161 = vld [vmem:[#allocation3 + $0xf0] sm:$0xff]
        %v1162 = vld [vmem:[#allocation3 + $0xf8] sm:$0xff]
        %v1163 = vld [vmem:[#allocation3 + $0x100] sm:$0xff]
        %v1164 = vld [vmem:[#allocation3 + $0x108] sm:$0xff]
        %v1165 = vld [vmem:[#allocation3 + $0x110] sm:$0xff]
        %v1166 = vld [vmem:[#allocation3 + $0x118] sm:$0xff]
        %v1167 = vld [vmem:[#allocation3 + $0x120] sm:$0xff]
        %v1168 = vld [vmem:[#allocation3 + $0x128] sm:$0xff]
        %v1169 = vld [vmem:[#allocation3 + $0x130] sm:$0xff]
        %v1170 = vld [vmem:[#allocation3 + $0x138] sm:$0xff]
        %v1171 = vld [vmem:[#allocation3 + $0x140] sm:$0xff]
        %v1172 = vld [vmem:[#allocation3 + $0x148] sm:$0xff]
        %v1173 = vld [vmem:[#allocation3 + $0x150] sm:$0xff]
        %v1174 = vld [vmem:[#allocation3 + $0x158] sm:$0xff]
        %v1175 = vld [vmem:[#allocation3 + $0x160] sm:$0xff]
        %v1176 = vld [vmem:[#allocation3 + $0x168] sm:$0xff]
        %v1177 = vld [vmem:[#allocation3 + $0x170] sm:$0xff]
        %v1178 = vld [vmem:[#allocation3 + $0x178] sm:$0xff]
        %v1179 = vld [vmem:[#allocation3 + $0x180] sm:$0xff]
        %v1180 = vld [vmem:[#allocation3 + $0x188] sm:$0xff]
        %v1181 = vld [vmem:[#allocation3 + $0x190] sm:$0xff]
        %v1182 = vld [vmem:[#allocation3 + $0x198] sm:$0xff]
        %v1183 = vld [vmem:[#allocation3 + $0x1a0] sm:$0xff]
        %v1184 = vld [vmem:[#allocation3 + $0x1a8] sm:$0xff]
        %v1185 = vld [vmem:[#allocation3 + $0x1b0] sm:$0xff]
        %v1186 = vld [vmem:[#allocation3 + $0x1b8] sm:$0xff]
        %v1187 = vld [vmem:[#allocation3 + $0x1c0] sm:$0xff]
        %v1188 = vld [vmem:[#allocation3 + $0x1c8] sm:$0xff]
        %v1189 = vld [vmem:[#allocation3 + $0x1d0] sm:$0xff]
        %v1190 = vld [vmem:[#allocation3 + $0x1d8] sm:$0xff]
        %v1191 = vld [vmem:[#allocation3 + $0x1e0] sm:$0xff]
        %v1192 = vld [vmem:[#allocation3 + $0x1e8] sm:$0xff]
        %v1193 = vld [vmem:[#allocation3 + $0x1f0] sm:$0xff]
        %v1194 = vld [vmem:[#allocation3 + $0x1f8] sm:$0xff]
        %v1195 = vld [vmem:[#allocation3 + $0x200] sm:$0xff]
        %v1196 = vld [vmem:[#allocation3 + $0x208] sm:$0xff]
        %v1197 = vld [vmem:[#allocation3 + $0x210] sm:$0xff]
        %v1198 = vld [vmem:[#allocation3 + $0x218] sm:$0xff]
        %v1199 = vld [vmem:[#allocation3 + $0x220] sm:$0xff]
        %v1200 = vld [vmem:[#allocation3 + $0x228] sm:$0xff]
        %v1201 = vld [vmem:[#allocation3 + $0x230] sm:$0xff]
        %v1202 = vld [vmem:[#allocation3 + $0x238] sm:$0xff]
        %v1203 = vld [vmem:[#allocation3 + $0x240] sm:$0xff]
        %v1204 = vld [vmem:[#allocation3 + $0x248] sm:$0xff]
        %v1205 = vld [vmem:[#allocation3 + $0x250] sm:$0xff]
        %v1206 = vld [vmem:[#allocation3 + $0x258] sm:$0xff]
        %v1207 = vld [vmem:[#allocation3 + $0x260] sm:$0xff]
        %v1208 = vld [vmem:[#allocation3 + $0x268] sm:$0xff]
        %v1209 = vld [vmem:[#allocation3 + $0x270] sm:$0xff]
        %v1210 = vld [vmem:[#allocation3 + $0x278] sm:$0xff]
        %v1211 = vld [vmem:[#allocation3 + $0x280] sm:$0xff]
        %v1212 = vld [vmem:[#allocation3 + $0x288] sm:$0xff]
        %v1213 = vld [vmem:[#allocation3 + $0x290] sm:$0xff]
        %v1214 = vld [vmem:[#allocation3 + $0x298] sm:$0xff]
        %v1215 = vld [vmem:[#allocation3 + $0x2a0] sm:$0xff]
        %v1216 = vld [vmem:[#allocation3 + $0x2a8] sm:$0xff]
        %v1217 = vld [vmem:[#allocation3 + $0x2b0] sm:$0xff]
        %v1218 = vld [vmem:[#allocation3 + $0x2b8] sm:$0xff]
        %v1219 = vld [vmem:[#allocation3 + $0x2c0] sm:$0xff]
        %v1220 = vld [vmem:[#allocation3 + $0x2c8] sm:$0xff]
        %v1221 = vld [vmem:[#allocation3 + $0x2d0] sm:$0xff]
        %v1222 = vld [vmem:[#allocation3 + $0x2d8] sm:$0xff]
        %v1223 = vld [vmem:[#allocation3 + $0x2e0] sm:$0xff]
        %v1224 = vld [vmem:[#allocation3 + $0x2e8] sm:$0xff]
        %v1225 = vld [vmem:[#allocation3 + $0x2f0] sm:$0xff]
        %v1226 = vld [vmem:[#allocation3 + $0x2f8] sm:$0xff]
        %v1227 = vld [vmem:[#allocation3 + $0x300] sm:$0xff]
        %v1228 = vld [vmem:[#allocation3 + $0x308] sm:$0xff]
        %v1229 = vld [vmem:[#allocation3 + $0x310] sm:$0xff]
        %v1230 = vld [vmem:[#allocation3 + $0x318] sm:$0xff]
        %v1231 = vld [vmem:[#allocation3 + $0x320] sm:$0xff]
        %v1232 = vld [vmem:[#allocation3 + $0x328] sm:$0xff]
        %v1233 = vld [vmem:[#allocation3 + $0x330] sm:$0xff]
        %v1234 = vld [vmem:[#allocation3 + $0x338] sm:$0xff]
        %v1235 = vld [vmem:[#allocation3 + $0x340] sm:$0xff]
        %v1236 = vld [vmem:[#allocation3 + $0x348] sm:$0xff]
        %v1237 = vld [vmem:[#allocation3 + $0x350] sm:$0xff]
        %v1238 = vld [vmem:[#allocation3 + $0x358] sm:$0xff]
        %v1239 = vld [vmem:[#allocation3 + $0x360] sm:$0xff]
        %v1240 = vld [vmem:[#allocation3 + $0x368] sm:$0xff]
        %v1241 = vld [vmem:[#allocation3 + $0x370] sm:$0xff]
        %v1242 = vld [vmem:[#allocation3 + $0x378] sm:$0xff]
        %v1243 = vld [vmem:[#allocation3 + $0x380] sm:$0xff]
        %v1244 = vld [vmem:[#allocation3 + $0x388] sm:$0xff]
        %v1245 = vld [vmem:[#allocation3 + $0x390] sm:$0xff]
        %v1246 = vld [vmem:[#allocation3 + $0x398] sm:$0xff]
        %v1247 = vld [vmem:[#allocation3 + $0x3a0] sm:$0xff]
        %v1248 = vld [vmem:[#allocation3 + $0x3a8] sm:$0xff]
        %v1249 = vld [vmem:[#allocation3 + $0x3b0] sm:$0xff]
        %v1250 = vld [vmem:[#allocation3 + $0x3b8] sm:$0xff]
        %v1251 = vld [vmem:[#allocation3 + $0x3c0] sm:$0xff]
        %v1252 = vld [vmem:[#allocation3 + $0x3c8] sm:$0xff]
        %v1253 = vld [vmem:[#allocation3 + $0x3d0] sm:$0xff]
        %v1254 = vld [vmem:[#allocation3 + $0x3d8] sm:$0xff]
        %v1255 = vld [vmem:[#allocation3 + $0x3e0] sm:$0xff]
        %v1256 = vld [vmem:[#allocation3 + $0x3e8] sm:$0xff]
        %v1257 = vld [vmem:[#allocation3 + $0x3f0] sm:$0xff]
        %v1258 = vld [vmem:[#allocation3 + $0x3f8] sm:$0xff]
        %v1259 = vld [vmem:[%s4] sm:$0xf]
        %v1261 = vlaneseq
        %v1262 = vshrl.u32 %v1261, 7
        %v1263 = vsub.s32 0, %v1262
        %v1264 = vrot.slane %v1259, %v1263
        %v1265 = vlaneseq
        %v1266 = vshrl.u32 %v1265, 7
        %v1267 = vsub.s32 1, %v1266
        %v1268 = vrot.slane %v1259, %v1267
        %v1269 = vlaneseq
        %v1270 = vshrl.u32 %v1269, 7
        %v1271 = vsub.s32 2, %v1270
        %v1272 = vrot.slane %v1259, %v1271
        %v1273 = vlaneseq
        %v1274 = vshrl.u32 %v1273, 7
        %v1275 = vsub.s32 3, %v1274
        %v1276 = vrot.slane %v1259, %v1275
        %v1409 = vunpack.c.l.b16 %v1131
        %v1410 = vunpack.c.h.b16 %v1131
        %v1411 = vunpack.c.l.b16 %v1132
        %v1412 = vunpack.c.h.b16 %v1132
        %v1413 = vunpack.c.l.b16 %v1133
        %v1414 = vunpack.c.h.b16 %v1133
        %v1415 = vunpack.c.l.b16 %v1134
        %v1416 = vunpack.c.h.b16 %v1134
        %v1417 = vunpack.c.l.b16 %v1135
        %v1418 = vunpack.c.h.b16 %v1135
        %v1419 = vunpack.c.l.b16 %v1136
        %v1420 = vunpack.c.h.b16 %v1136
        %v1421 = vunpack.c.l.b16 %v1137
        %v1422 = vunpack.c.h.b16 %v1137
        %v1423 = vunpack.c.l.b16 %v1138
        %v1424 = vunpack.c.h.b16 %v1138
        %v1425 = vunpack.c.l.b16 %v1139
        %v1426 = vunpack.c.h.b16 %v1139
        %v1427 = vunpack.c.l.b16 %v1140
        %v1428 = vunpack.c.h.b16 %v1140
        %v1429 = vunpack.c.l.b16 %v1141
        %v1430 = vunpack.c.h.b16 %v1141
        %v1431 = vunpack.c.l.b16 %v1142
        %v1432 = vunpack.c.h.b16 %v1142
        %v1433 = vunpack.c.l.b16 %v1143
        %v1434 = vunpack.c.h.b16 %v1143
        %v1435 = vunpack.c.l.b16 %v1144
        %v1436 = vunpack.c.h.b16 %v1144
        %v1437 = vunpack.c.l.b16 %v1145
        %v1438 = vunpack.c.h.b16 %v1145
        %v1439 = vunpack.c.l.b16 %v1146
        %v1440 = vunpack.c.h.b16 %v1146
        %v1441 = vunpack.c.l.b16 %v1147
        %v1442 = vunpack.c.h.b16 %v1147
        %v1443 = vunpack.c.l.b16 %v1148
        %v1444 = vunpack.c.h.b16 %v1148
        %v1445 = vunpack.c.l.b16 %v1149
        %v1446 = vunpack.c.h.b16 %v1149
        %v1447 = vunpack.c.l.b16 %v1150
        %v1448 = vunpack.c.h.b16 %v1150
        %v1449 = vunpack.c.l.b16 %v1151
        %v1450 = vunpack.c.h.b16 %v1151
        %v1451 = vunpack.c.l.b16 %v1152
        %v1452 = vunpack.c.h.b16 %v1152
        %v1453 = vunpack.c.l.b16 %v1153
        %v1454 = vunpack.c.h.b16 %v1153
        %v1455 = vunpack.c.l.b16 %v1154
        %v1456 = vunpack.c.h.b16 %v1154
        %v1457 = vunpack.c.l.b16 %v1155
        %v1458 = vunpack.c.h.b16 %v1155
        %v1459 = vunpack.c.l.b16 %v1156
        %v1460 = vunpack.c.h.b16 %v1156
        %v1461 = vunpack.c.l.b16 %v1157
        %v1462 = vunpack.c.h.b16 %v1157
        %v1463 = vunpack.c.l.b16 %v1158
        %v1464 = vunpack.c.h.b16 %v1158
        %v1465 = vunpack.c.l.b16 %v1159
        %v1466 = vunpack.c.h.b16 %v1159
        %v1467 = vunpack.c.l.b16 %v1160
        %v1468 = vunpack.c.h.b16 %v1160
        %v1469 = vunpack.c.l.b16 %v1161
        %v1470 = vunpack.c.h.b16 %v1161
        %v1471 = vunpack.c.l.b16 %v1162
        %v1472 = vunpack.c.h.b16 %v1162
        %v1473 = vunpack.c.l.b16 %v1163
        %v1474 = vunpack.c.h.b16 %v1163
        %v1475 = vunpack.c.l.b16 %v1164
        %v1476 = vunpack.c.h.b16 %v1164
        %v1477 = vunpack.c.l.b16 %v1165
        %v1478 = vunpack.c.h.b16 %v1165
        %v1479 = vunpack.c.l.b16 %v1166
        %v1480 = vunpack.c.h.b16 %v1166
        %v1481 = vunpack.c.l.b16 %v1167
        %v1482 = vunpack.c.h.b16 %v1167
        %v1483 = vunpack.c.l.b16 %v1168
        %v1484 = vunpack.c.h.b16 %v1168
        %v1485 = vunpack.c.l.b16 %v1169
        %v1486 = vunpack.c.h.b16 %v1169
        %v1487 = vunpack.c.l.b16 %v1170
        %v1488 = vunpack.c.h.b16 %v1170
        %v1489 = vunpack.c.l.b16 %v1171
        %v1490 = vunpack.c.h.b16 %v1171
        %v1491 = vunpack.c.l.b16 %v1172
        %v1492 = vunpack.c.h.b16 %v1172
        %v1493 = vunpack.c.l.b16 %v1173
        %v1494 = vunpack.c.h.b16 %v1173
        %v1495 = vunpack.c.l.b16 %v1174
        %v1496 = vunpack.c.h.b16 %v1174
        %v1497 = vunpack.c.l.b16 %v1175
        %v1498 = vunpack.c.h.b16 %v1175
        %v1499 = vunpack.c.l.b16 %v1176
        %v1500 = vunpack.c.h.b16 %v1176
        %v1501 = vunpack.c.l.b16 %v1177
        %v1502 = vunpack.c.h.b16 %v1177
        %v1503 = vunpack.c.l.b16 %v1178
        %v1504 = vunpack.c.h.b16 %v1178
        %v1505 = vunpack.c.l.b16 %v1179
        %v1506 = vunpack.c.h.b16 %v1179
        %v1507 = vunpack.c.l.b16 %v1180
        %v1508 = vunpack.c.h.b16 %v1180
        %v1509 = vunpack.c.l.b16 %v1181
        %v1510 = vunpack.c.h.b16 %v1181
        %v1511 = vunpack.c.l.b16 %v1182
        %v1512 = vunpack.c.h.b16 %v1182
        %v1513 = vunpack.c.l.b16 %v1183
        %v1514 = vunpack.c.h.b16 %v1183
        %v1515 = vunpack.c.l.b16 %v1184
        %v1516 = vunpack.c.h.b16 %v1184
        %v1517 = vunpack.c.l.b16 %v1185
        %v1518 = vunpack.c.h.b16 %v1185
        %v1519 = vunpack.c.l.b16 %v1186
        %v1520 = vunpack.c.h.b16 %v1186
        %v1521 = vunpack.c.l.b16 %v1187
        %v1522 = vunpack.c.h.b16 %v1187
        %v1523 = vunpack.c.l.b16 %v1188
        %v1524 = vunpack.c.h.b16 %v1188
        %v1525 = vunpack.c.l.b16 %v1189
        %v1526 = vunpack.c.h.b16 %v1189
        %v1527 = vunpack.c.l.b16 %v1190
        %v1528 = vunpack.c.h.b16 %v1190
        %v1529 = vunpack.c.l.b16 %v1191
        %v1530 = vunpack.c.h.b16 %v1191
        %v1531 = vunpack.c.l.b16 %v1192
        %v1532 = vunpack.c.h.b16 %v1192
        %v1533 = vunpack.c.l.b16 %v1193
        %v1534 = vunpack.c.h.b16 %v1193
        %v1535 = vunpack.c.l.b16 %v1194
        %v1536 = vunpack.c.h.b16 %v1194
        %v1537 = vunpack.c.l.b16 %v1195
        %v1538 = vunpack.c.h.b16 %v1195
        %v1539 = vunpack.c.l.b16 %v1196
        %v1540 = vunpack.c.h.b16 %v1196
        %v1541 = vunpack.c.l.b16 %v1197
        %v1542 = vunpack.c.h.b16 %v1197
        %v1543 = vunpack.c.l.b16 %v1198
        %v1544 = vunpack.c.h.b16 %v1198
        %v1545 = vunpack.c.l.b16 %v1199
        %v1546 = vunpack.c.h.b16 %v1199
        %v1547 = vunpack.c.l.b16 %v1200
        %v1548 = vunpack.c.h.b16 %v1200
        %v1549 = vunpack.c.l.b16 %v1201
        %v1550 = vunpack.c.h.b16 %v1201
        %v1551 = vunpack.c.l.b16 %v1202
        %v1552 = vunpack.c.h.b16 %v1202
        %v1553 = vunpack.c.l.b16 %v1203
        %v1554 = vunpack.c.h.b16 %v1203
        %v1555 = vunpack.c.l.b16 %v1204
        %v1556 = vunpack.c.h.b16 %v1204
        %v1557 = vunpack.c.l.b16 %v1205
        %v1558 = vunpack.c.h.b16 %v1205
        %v1559 = vunpack.c.l.b16 %v1206
        %v1560 = vunpack.c.h.b16 %v1206
        %v1561 = vunpack.c.l.b16 %v1207
        %v1562 = vunpack.c.h.b16 %v1207
        %v1563 = vunpack.c.l.b16 %v1208
        %v1564 = vunpack.c.h.b16 %v1208
        %v1565 = vunpack.c.l.b16 %v1209
        %v1566 = vunpack.c.h.b16 %v1209
        %v1567 = vunpack.c.l.b16 %v1210
        %v1568 = vunpack.c.h.b16 %v1210
        %v1569 = vunpack.c.l.b16 %v1211
        %v1570 = vunpack.c.h.b16 %v1211
        %v1571 = vunpack.c.l.b16 %v1212
        %v1572 = vunpack.c.h.b16 %v1212
        %v1573 = vunpack.c.l.b16 %v1213
        %v1574 = vunpack.c.h.b16 %v1213
        %v1575 = vunpack.c.l.b16 %v1214
        %v1576 = vunpack.c.h.b16 %v1214
        %v1577 = vunpack.c.l.b16 %v1215
        %v1578 = vunpack.c.h.b16 %v1215
        %v1579 = vunpack.c.l.b16 %v1216
        %v1580 = vunpack.c.h.b16 %v1216
        %v1581 = vunpack.c.l.b16 %v1217
        %v1582 = vunpack.c.h.b16 %v1217
        %v1583 = vunpack.c.l.b16 %v1218
        %v1584 = vunpack.c.h.b16 %v1218
        %v1585 = vunpack.c.l.b16 %v1219
        %v1586 = vunpack.c.h.b16 %v1219
        %v1587 = vunpack.c.l.b16 %v1220
        %v1588 = vunpack.c.h.b16 %v1220
        %v1589 = vunpack.c.l.b16 %v1221
        %v1590 = vunpack.c.h.b16 %v1221
        %v1591 = vunpack.c.l.b16 %v1222
        %v1592 = vunpack.c.h.b16 %v1222
        %v1593 = vunpack.c.l.b16 %v1223
        %v1594 = vunpack.c.h.b16 %v1223
        %v1595 = vunpack.c.l.b16 %v1224
        %v1596 = vunpack.c.h.b16 %v1224
        %v1597 = vunpack.c.l.b16 %v1225
        %v1598 = vunpack.c.h.b16 %v1225
        %v1599 = vunpack.c.l.b16 %v1226
        %v1600 = vunpack.c.h.b16 %v1226
        %v1601 = vunpack.c.l.b16 %v1227
        %v1602 = vunpack.c.h.b16 %v1227
        %v1603 = vunpack.c.l.b16 %v1228
        %v1604 = vunpack.c.h.b16 %v1228
        %v1605 = vunpack.c.l.b16 %v1229
        %v1606 = vunpack.c.h.b16 %v1229
        %v1607 = vunpack.c.l.b16 %v1230
        %v1608 = vunpack.c.h.b16 %v1230
        %v1609 = vunpack.c.l.b16 %v1231
        %v1610 = vunpack.c.h.b16 %v1231
        %v1611 = vunpack.c.l.b16 %v1232
        %v1612 = vunpack.c.h.b16 %v1232
        %v1613 = vunpack.c.l.b16 %v1233
        %v1614 = vunpack.c.h.b16 %v1233
        %v1615 = vunpack.c.l.b16 %v1234
        %v1616 = vunpack.c.h.b16 %v1234
        %v1617 = vunpack.c.l.b16 %v1235
        %v1618 = vunpack.c.h.b16 %v1235
        %v1619 = vunpack.c.l.b16 %v1236
        %v1620 = vunpack.c.h.b16 %v1236
        %v1621 = vunpack.c.l.b16 %v1237
        %v1622 = vunpack.c.h.b16 %v1237
        %v1623 = vunpack.c.l.b16 %v1238
        %v1624 = vunpack.c.h.b16 %v1238
        %v1625 = vunpack.c.l.b16 %v1239
        %v1626 = vunpack.c.h.b16 %v1239
        %v1627 = vunpack.c.l.b16 %v1240
        %v1628 = vunpack.c.h.b16 %v1240
        %v1629 = vunpack.c.l.b16 %v1241
        %v1630 = vunpack.c.h.b16 %v1241
        %v1631 = vunpack.c.l.b16 %v1242
        %v1632 = vunpack.c.h.b16 %v1242
        %v1633 = vunpack.c.l.b16 %v1243
        %v1634 = vunpack.c.h.b16 %v1243
        %v1635 = vunpack.c.l.b16 %v1244
        %v1636 = vunpack.c.h.b16 %v1244
        %v1637 = vunpack.c.l.b16 %v1245
        %v1638 = vunpack.c.h.b16 %v1245
        %v1639 = vunpack.c.l.b16 %v1246
        %v1640 = vunpack.c.h.b16 %v1246
        %v1641 = vunpack.c.l.b16 %v1247
        %v1642 = vunpack.c.h.b16 %v1247
        %v1643 = vunpack.c.l.b16 %v1248
        %v1644 = vunpack.c.h.b16 %v1248
        %v1645 = vunpack.c.l.b16 %v1249
        %v1646 = vunpack.c.h.b16 %v1249
        %v1647 = vunpack.c.l.b16 %v1250
        %v1648 = vunpack.c.h.b16 %v1250
        %v1649 = vunpack.c.l.b16 %v1251
        %v1650 = vunpack.c.h.b16 %v1251
        %v1651 = vunpack.c.l.b16 %v1252
        %v1652 = vunpack.c.h.b16 %v1252
        %v1653 = vunpack.c.l.b16 %v1253
        %v1654 = vunpack.c.h.b16 %v1253
        %v1655 = vunpack.c.l.b16 %v1254
        %v1656 = vunpack.c.h.b16 %v1254
        %v1657 = vunpack.c.l.b16 %v1255
        %v1658 = vunpack.c.h.b16 %v1255
        %v1659 = vunpack.c.l.b16 %v1256
        %v1660 = vunpack.c.h.b16 %v1256
        %v1661 = vunpack.c.l.b16 %v1257
        %v1662 = vunpack.c.h.b16 %v1257
        %v1663 = vunpack.c.l.b16 %v1258
        %v1664 = vunpack.c.h.b16 %v1258
        %v1665 = vpack.c.b16 %v1413, %v1409
        %v1666 = vpack.c.b16 %v1414, %v1410
        %v1667 = vpack.c.b16 %v1415, %v1411
        %v1668 = vpack.c.b16 %v1416, %v1412
        %v1669 = vpack.c.b16 %v1421, %v1417
        %v1670 = vpack.c.b16 %v1422, %v1418
        %v1671 = vpack.c.b16 %v1423, %v1419
        %v1672 = vpack.c.b16 %v1424, %v1420
        %v1673 = vpack.c.b16 %v1429, %v1425
        %v1674 = vpack.c.b16 %v1430, %v1426
        %v1675 = vpack.c.b16 %v1431, %v1427
        %v1676 = vpack.c.b16 %v1432, %v1428
        %v1677 = vpack.c.b16 %v1437, %v1433
        %v1678 = vpack.c.b16 %v1438, %v1434
        %v1679 = vpack.c.b16 %v1439, %v1435
        %v1680 = vpack.c.b16 %v1440, %v1436
        %v1681 = vpack.c.b16 %v1445, %v1441
        %v1682 = vpack.c.b16 %v1446, %v1442
        %v1683 = vpack.c.b16 %v1447, %v1443
        %v1684 = vpack.c.b16 %v1448, %v1444
        %v1685 = vpack.c.b16 %v1453, %v1449
        %v1686 = vpack.c.b16 %v1454, %v1450
        %v1687 = vpack.c.b16 %v1455, %v1451
        %v1688 = vpack.c.b16 %v1456, %v1452
        %v1689 = vpack.c.b16 %v1461, %v1457
        %v1690 = vpack.c.b16 %v1462, %v1458
        %v1691 = vpack.c.b16 %v1463, %v1459
        %v1692 = vpack.c.b16 %v1464, %v1460
        %v1693 = vpack.c.b16 %v1469, %v1465
        %v1694 = vpack.c.b16 %v1470, %v1466
        %v1695 = vpack.c.b16 %v1471, %v1467
        %v1696 = vpack.c.b16 %v1472, %v1468
        %v1697 = vpack.c.b16 %v1477, %v1473
        %v1698 = vpack.c.b16 %v1478, %v1474
        %v1699 = vpack.c.b16 %v1479, %v1475
        %v1700 = vpack.c.b16 %v1480, %v1476
        %v1701 = vpack.c.b16 %v1485, %v1481
        %v1702 = vpack.c.b16 %v1486, %v1482
        %v1703 = vpack.c.b16 %v1487, %v1483
        %v1704 = vpack.c.b16 %v1488, %v1484
        %v1705 = vpack.c.b16 %v1493, %v1489
        %v1706 = vpack.c.b16 %v1494, %v1490
        %v1707 = vpack.c.b16 %v1495, %v1491
        %v1708 = vpack.c.b16 %v1496, %v1492
        %v1709 = vpack.c.b16 %v1501, %v1497
        %v1710 = vpack.c.b16 %v1502, %v1498
        %v1711 = vpack.c.b16 %v1503, %v1499
        %v1712 = vpack.c.b16 %v1504, %v1500
        %v1713 = vpack.c.b16 %v1509, %v1505
        %v1714 = vpack.c.b16 %v1510, %v1506
        %v1715 = vpack.c.b16 %v1511, %v1507
        %v1716 = vpack.c.b16 %v1512, %v1508
        %v1717 = vpack.c.b16 %v1517, %v1513
        %v1718 = vpack.c.b16 %v1518, %v1514
        %v1719 = vpack.c.b16 %v1519, %v1515
        %v1720 = vpack.c.b16 %v1520, %v1516
        %v1721 = vpack.c.b16 %v1525, %v1521
        %v1722 = vpack.c.b16 %v1526, %v1522
        %v1723 = vpack.c.b16 %v1527, %v1523
        %v1724 = vpack.c.b16 %v1528, %v1524
        %v1725 = vpack.c.b16 %v1533, %v1529
        %v1726 = vpack.c.b16 %v1534, %v1530
        %v1727 = vpack.c.b16 %v1535, %v1531
        %v1728 = vpack.c.b16 %v1536, %v1532
        %v1729 = vpack.c.b16 %v1541, %v1537
        %v1730 = vpack.c.b16 %v1542, %v1538
        %v1731 = vpack.c.b16 %v1543, %v1539
        %v1732 = vpack.c.b16 %v1544, %v1540
        %v1733 = vpack.c.b16 %v1549, %v1545
        %v1734 = vpack.c.b16 %v1550, %v1546
        %v1735 = vpack.c.b16 %v1551, %v1547
        %v1736 = vpack.c.b16 %v1552, %v1548
        %v1737 = vpack.c.b16 %v1557, %v1553
        %v1738 = vpack.c.b16 %v1558, %v1554
        %v1739 = vpack.c.b16 %v1559, %v1555
        %v1740 = vpack.c.b16 %v1560, %v1556
        %v1741 = vpack.c.b16 %v1565, %v1561
        %v1742 = vpack.c.b16 %v1566, %v1562
        %v1743 = vpack.c.b16 %v1567, %v1563
        %v1744 = vpack.c.b16 %v1568, %v1564
        %v1745 = vpack.c.b16 %v1573, %v1569
        %v1746 = vpack.c.b16 %v1574, %v1570
        %v1747 = vpack.c.b16 %v1575, %v1571
        %v1748 = vpack.c.b16 %v1576, %v1572
        %v1749 = vpack.c.b16 %v1581, %v1577
        %v1750 = vpack.c.b16 %v1582, %v1578
        %v1751 = vpack.c.b16 %v1583, %v1579
        %v1752 = vpack.c.b16 %v1584, %v1580
        %v1753 = vpack.c.b16 %v1589, %v1585
        %v1754 = vpack.c.b16 %v1590, %v1586
        %v1755 = vpack.c.b16 %v1591, %v1587
        %v1756 = vpack.c.b16 %v1592, %v1588
        %v1757 = vpack.c.b16 %v1597, %v1593
        %v1758 = vpack.c.b16 %v1598, %v1594
        %v1759 = vpack.c.b16 %v1599, %v1595
        %v1760 = vpack.c.b16 %v1600, %v1596
        %v1761 = vpack.c.b16 %v1605, %v1601
        %v1762 = vpack.c.b16 %v1606, %v1602
        %v1763 = vpack.c.b16 %v1607, %v1603
        %v1764 = vpack.c.b16 %v1608, %v1604
        %v1765 = vpack.c.b16 %v1613, %v1609
        %v1766 = vpack.c.b16 %v1614, %v1610
        %v1767 = vpack.c.b16 %v1615, %v1611
        %v1768 = vpack.c.b16 %v1616, %v1612
        %v1769 = vpack.c.b16 %v1621, %v1617
        %v1770 = vpack.c.b16 %v1622, %v1618
        %v1771 = vpack.c.b16 %v1623, %v1619
        %v1772 = vpack.c.b16 %v1624, %v1620
        %v1773 = vpack.c.b16 %v1629, %v1625
        %v1774 = vpack.c.b16 %v1630, %v1626
        %v1775 = vpack.c.b16 %v1631, %v1627
        %v1776 = vpack.c.b16 %v1632, %v1628
        %v1777 = vpack.c.b16 %v1637, %v1633
        %v1778 = vpack.c.b16 %v1638, %v1634
        %v1779 = vpack.c.b16 %v1639, %v1635
        %v1780 = vpack.c.b16 %v1640, %v1636
        %v1781 = vpack.c.b16 %v1645, %v1641
        %v1782 = vpack.c.b16 %v1646, %v1642
        %v1783 = vpack.c.b16 %v1647, %v1643
        %v1784 = vpack.c.b16 %v1648, %v1644
        %v1785 = vpack.c.b16 %v1653, %v1649
        %v1786 = vpack.c.b16 %v1654, %v1650
        %v1787 = vpack.c.b16 %v1655, %v1651
        %v1788 = vpack.c.b16 %v1656, %v1652
        %v1789 = vpack.c.b16 %v1661, %v1657
        %v1790 = vpack.c.b16 %v1662, %v1658
        %v1791 = vpack.c.b16 %v1663, %v1659
        %v1792 = vpack.c.b16 %v1664, %v1660
        %1921 = vmatprep.subr.bf16.mxu0 %v1666
        %1922 = vmatpush1.bf16.msra.mxu0 %v1665
        %1923 = vmatprep.subr.bf16.mxu0 %v1670
        %1924 = vmatpush1.bf16.msra.mxu0 %v1669
        %1925 = vmatprep.subr.bf16.mxu0 %v1674
        %1926 = vmatpush1.bf16.msra.mxu0 %v1673
        %1927 = vmatprep.subr.bf16.mxu0 %v1678
        %1928 = vmatpush1.bf16.msra.mxu0 %v1677
        %1929 = vmatprep.subr.bf16.mxu0 %v1682
        %1930 = vmatpush1.bf16.msra.mxu0 %v1681
        %1931 = vmatprep.subr.bf16.mxu0 %v1686
        %1932 = vmatpush1.bf16.msra.mxu0 %v1685
        %1933 = vmatprep.subr.bf16.mxu0 %v1690
        %1934 = vmatpush1.bf16.msra.mxu0 %v1689
        %1935 = vmatprep.subr.bf16.mxu0 %v1694
        %1936 = vmatpush1.bf16.msra.mxu0 %v1693
        %1937 = vmatprep.subr.bf16.mxu0 %v1698
        %1938 = vmatpush1.bf16.msra.mxu0 %v1697
        %1939 = vmatprep.subr.bf16.mxu0 %v1702
        %1940 = vmatpush1.bf16.msra.mxu0 %v1701
        %1941 = vmatprep.subr.bf16.mxu0 %v1706
        %1942 = vmatpush1.bf16.msra.mxu0 %v1705
        %1943 = vmatprep.subr.bf16.mxu0 %v1710
        %1944 = vmatpush1.bf16.msra.mxu0 %v1709
        %1945 = vmatprep.subr.bf16.mxu0 %v1714
        %1946 = vmatpush1.bf16.msra.mxu0 %v1713
        %1947 = vmatprep.subr.bf16.mxu0 %v1718
        %1948 = vmatpush1.bf16.msra.mxu0 %v1717
        %1949 = vmatprep.subr.bf16.mxu0 %v1722
        %1950 = vmatpush1.bf16.msra.mxu0 %v1721
        %1951 = vmatprep.subr.bf16.mxu0 %v1726
        %1952 = vmatpush1.bf16.msra.mxu0 %v1725
        %1953 = vmatprep.mubr.bf16.mxu0 %v1068
        %1954 = vmatmul.mubr.bf16.gmra.mrb[0].mxu0 %v1067
        %v1955 = vpop.f32.mrb[0].mxu0
        %v1956 = vadd.f32 %v1264, %v1955
        %v1957 = vpop.f32.mrb[0].mxu0
        %v1958 = vadd.f32 %v1268, %v1957
        %v1959 = vpop.f32.mrb[0].mxu0
        %v1960 = vadd.f32 %v1264, %v1959
        %v1961 = vpop.f32.mrb[0].mxu0
        %v1962 = vadd.f32 %v1268, %v1961
        %1963 = vmatprep.mubr.bf16.mxu0 %v1072
        %1964 = vmatmul.mubr.bf16.gmra.mrb[0].mxu0 %v1071
        %v1965 = vpop.f32.mrb[0].mxu0
        %v1966 = vadd.f32 %v1264, %v1965
        %v1967 = vpop.f32.mrb[0].mxu0
        %v1968 = vadd.f32 %v1268, %v1967
        %v1969 = vpop.f32.mrb[0].mxu0
        %v1970 = vadd.f32 %v1264, %v1969
        %v1971 = vpop.f32.mrb[0].mxu0
        %v1972 = vadd.f32 %v1268, %v1971
        %1973 = vmatprep.mubr.bf16.mxu0 %v1076
        %1974 = vmatmul.mubr.bf16.gmra.mrb[0].mxu0 %v1075
        %v1975 = vpop.f32.mrb[0].mxu0
        %v1976 = vadd.f32 %v1264, %v1975
        %v1977 = vpop.f32.mrb[0].mxu0
        %v1978 = vadd.f32 %v1268, %v1977
        %v1979 = vpop.f32.mrb[0].mxu0
        %v1980 = vadd.f32 %v1264, %v1979
        %v1981 = vpop.f32.mrb[0].mxu0
        %v1982 = vadd.f32 %v1268, %v1981
        %1983 = vmatprep.mubr.bf16.mxu0 %v1080
        %1984 = vmatmul.mubr.bf16.gmra.mrb[0].mxu0 %v1079
        %v1985 = vpop.f32.mrb[0].mxu0
        %v1986 = vadd.f32 %v1264, %v1985
        %v1987 = vpop.f32.mrb[0].mxu0
        %v1988 = vadd.f32 %v1268, %v1987
        %v1989 = vpop.f32.mrb[0].mxu0
        %v1990 = vadd.f32 %v1264, %v1989
        %v1991 = vpop.f32.mrb[0].mxu0
        %v1992 = vadd.f32 %v1268, %v1991
        %1993 = vmatprep.mubr.bf16.mxu0 %v1084
        %1994 = vmatmul.mubr.bf16.gmra.mrb[0].mxu0 %v1083
        %v1995 = vpop.f32.mrb[0].mxu0
        %v1996 = vadd.f32 %v1264, %v1995
        %v1997 = vpop.f32.mrb[0].mxu0
        %v1998 = vadd.f32 %v1268, %v1997
        %v1999 = vpop.f32.mrb[0].mxu0
        %v2000 = vadd.f32 %v1264, %v1999
        %v2001 = vpop.f32.mrb[0].mxu0
        %v2002 = vadd.f32 %v1268, %v2001
        %2003 = vmatprep.mubr.bf16.mxu0 %v1088
        %2004 = vmatmul.mubr.bf16.gmra.mrb[0].mxu0 %v1087
        %v2005 = vpop.f32.mrb[0].mxu0
        %v2006 = vadd.f32 %v1264, %v2005
        %v2007 = vpop.f32.mrb[0].mxu0
        %v2008 = vadd.f32 %v1268, %v2007
        %v2009 = vpop.f32.mrb[0].mxu0
        %v2010 = vadd.f32 %v1264, %v2009
        %v2011 = vpop.f32.mrb[0].mxu0
        %v2012 = vadd.f32 %v1268, %v2011
        %2013 = vmatprep.mubr.bf16.mxu0 %v1092
        %2014 = vmatmul.mubr.bf16.gmra.mrb[0].mxu0 %v1091
        %v2015 = vpop.f32.mrb[0].mxu0
        %v2016 = vadd.f32 %v1264, %v2015
        %v2017 = vpop.f32.mrb[0].mxu0
        %v2018 = vadd.f32 %v1268, %v2017
        %v2019 = vpop.f32.mrb[0].mxu0
        %v2020 = vadd.f32 %v1264, %v2019
        %v2021 = vpop.f32.mrb[0].mxu0
        %v2022 = vadd.f32 %v1268, %v2021
        %2023 = vmatprep.mubr.bf16.mxu0 %v1096
        %2024 = vmatmul.mubr.bf16.gmra.mrb[0].mxu0 %v1095
        %v2025 = vpop.f32.mrb[0].mxu0
        %v2026 = vadd.f32 %v1264, %v2025
        %v2027 = vpop.f32.mrb[0].mxu0
        %v2028 = vadd.f32 %v1268, %v2027
        %v2029 = vpop.f32.mrb[0].mxu0
        %v2030 = vadd.f32 %v1264, %v2029
        %v2031 = vpop.f32.mrb[0].mxu0
        %v2032 = vadd.f32 %v1268, %v2031
        %2033 = vmatprep.mubr.bf16.mxu0 %v1100
        %2034 = vmatmul.mubr.bf16.gmra.mrb[0].mxu0 %v1099
        %v2035 = vpop.f32.mrb[0].mxu0
        %v2036 = vadd.f32 %v1264, %v2035
        %v2037 = vpop.f32.mrb[0].mxu0
        %v2038 = vadd.f32 %v1268, %v2037
        %v2039 = vpop.f32.mrb[0].mxu0
        %v2040 = vadd.f32 %v1264, %v2039
        %v2041 = vpop.f32.mrb[0].mxu0
        %v2042 = vadd.f32 %v1268, %v2041
        %2043 = vmatprep.mubr.bf16.mxu0 %v1104
        %2044 = vmatmul.mubr.bf16.gmra.mrb[0].mxu0 %v1103
        %v2045 = vpop.f32.mrb[0].mxu0
        %v2046 = vadd.f32 %v1264, %v2045
        %v2047 = vpop.f32.mrb[0].mxu0
        %v2048 = vadd.f32 %v1268, %v2047
        %v2049 = vpop.f32.mrb[0].mxu0
        %v2050 = vadd.f32 %v1264, %v2049
        %v2051 = vpop.f32.mrb[0].mxu0
        %v2052 = vadd.f32 %v1268, %v2051
        %2053 = vmatprep.mubr.bf16.mxu0 %v1108
        %2054 = vmatmul.mubr.bf16.gmra.mrb[0].mxu0 %v1107
        %v2055 = vpop.f32.mrb[0].mxu0
        %v2056 = vadd.f32 %v1264, %v2055
        %v2057 = vpop.f32.mrb[0].mxu0
        %v2058 = vadd.f32 %v1268, %v2057
        %v2059 = vpop.f32.mrb[0].mxu0
        %v2060 = vadd.f32 %v1264, %v2059
        %v2061 = vpop.f32.mrb[0].mxu0
        %v2062 = vadd.f32 %v1268, %v2061
        %2063 = vmatprep.mubr.bf16.mxu0 %v1112
        %2064 = vmatmul.mubr.bf16.gmra.mrb[0].mxu0 %v1111
        %v2065 = vpop.f32.mrb[0].mxu0
        %v2066 = vadd.f32 %v1264, %v2065
        %v2067 = vpop.f32.mrb[0].mxu0
        %v2068 = vadd.f32 %v1268, %v2067
        %v2069 = vpop.f32.mrb[0].mxu0
        %v2070 = vadd.f32 %v1264, %v2069
        %v2071 = vpop.f32.mrb[0].mxu0
        %v2072 = vadd.f32 %v1268, %v2071
        %2073 = vmatprep.mubr.bf16.mxu0 %v1116
        %2074 = vmatmul.mubr.bf16.gmra.mrb[0].mxu0 %v1115
        %v2075 = vpop.f32.mrb[0].mxu0
        %v2076 = vadd.f32 %v1264, %v2075
        %v2077 = vpop.f32.mrb[0].mxu0
        %v2078 = vadd.f32 %v1268, %v2077
        %v2079 = vpop.f32.mrb[0].mxu0
        %v2080 = vadd.f32 %v1264, %v2079
        %v2081 = vpop.f32.mrb[0].mxu0
        %v2082 = vadd.f32 %v1268, %v2081
        %2083 = vmatprep.mubr.bf16.mxu0 %v1120
        %2084 = vmatmul.mubr.bf16.gmra.mrb[0].mxu0 %v1119
        %v2085 = vpop.f32.mrb[0].mxu0
        %v2086 = vadd.f32 %v1264, %v2085
        %v2087 = vpop.f32.mrb[0].mxu0
        %v2088 = vadd.f32 %v1268, %v2087
        %v2089 = vpop.f32.mrb[0].mxu0
        %v2090 = vadd.f32 %v1264, %v2089
        %v2091 = vpop.f32.mrb[0].mxu0
        %v2092 = vadd.f32 %v1268, %v2091
        %2093 = vmatprep.mubr.bf16.mxu0 %v1124
        %2094 = vmatmul.mubr.bf16.gmra.mrb[0].mxu0 %v1123
        %v2095 = vpop.f32.mrb[0].mxu0
        %v2096 = vadd.f32 %v1264, %v2095
        %v2097 = vpop.f32.mrb[0].mxu0
        %v2098 = vadd.f32 %v1268, %v2097
        %v2099 = vpop.f32.mrb[0].mxu0
        %v2100 = vadd.f32 %v1264, %v2099
        %v2101 = vpop.f32.mrb[0].mxu0
        %v2102 = vadd.f32 %v1268, %v2101
        %2103 = vmatprep.mubr.bf16.mxu0 %v1128
        %2104 = vmatmul.mubr.bf16.gmra.mrb[0].mxu0 %v1127
        %v2105 = vpop.f32.mrb[0].mxu0
        %v2106 = vadd.f32 %v1264, %v2105
        %v2107 = vpop.f32.mrb[0].mxu0
        %v2108 = vadd.f32 %v1268, %v2107
        %v2109 = vpop.f32.mrb[0].mxu0
        %v2110 = vadd.f32 %v1264, %v2109
        %v2111 = vpop.f32.mrb[0].mxu0
        %v2112 = vadd.f32 %v1268, %v2111
        %2113 = vdwg.mxu0
        %2114 = vmatprep.subr.bf16.mxu0 %v1730
        %2115 = vmatpush1.bf16.msra.mxu0 %v1729
        %2116 = vmatprep.subr.bf16.mxu0 %v1734
        %2117 = vmatpush1.bf16.msra.mxu0 %v1733
        %2118 = vmatprep.subr.bf16.mxu0 %v1738
        %2119 = vmatpush1.bf16.msra.mxu0 %v1737
        %2120 = vmatprep.subr.bf16.mxu0 %v1742
        %2121 = vmatpush1.bf16.msra.mxu0 %v1741
        %2122 = vmatprep.subr.bf16.mxu0 %v1746
        %2123 = vmatpush1.bf16.msra.mxu0 %v1745
        %2124 = vmatprep.subr.bf16.mxu0 %v1750
        %2125 = vmatpush1.bf16.msra.mxu0 %v1749
        %2126 = vmatprep.subr.bf16.mxu0 %v1754
        %2127 = vmatpush1.bf16.msra.mxu0 %v1753
        %2128 = vmatprep.subr.bf16.mxu0 %v1758
        %2129 = vmatpush1.bf16.msra.mxu0 %v1757
        %2130 = vmatprep.subr.bf16.mxu0 %v1762
        %2131 = vmatpush1.bf16.msra.mxu0 %v1761
        %2132 = vmatprep.subr.bf16.mxu0 %v1766
        %2133 = vmatpush1.bf16.msra.mxu0 %v1765
        %2134 = vmatprep.subr.bf16.mxu0 %v1770
        %2135 = vmatpush1.bf16.msra.mxu0 %v1769
        %2136 = vmatprep.subr.bf16.mxu0 %v1774
        %2137 = vmatpush1.bf16.msra.mxu0 %v1773
        %2138 = vmatprep.subr.bf16.mxu0 %v1778
        %2139 = vmatpush1.bf16.msra.mxu0 %v1777
        %2140 = vmatprep.subr.bf16.mxu0 %v1782
        %2141 = vmatpush1.bf16.msra.mxu0 %v1781
        %2142 = vmatprep.subr.bf16.mxu0 %v1786
        %2143 = vmatpush1.bf16.msra.mxu0 %v1785
        %2144 = vmatprep.subr.bf16.mxu0 %v1790
        %2145 = vmatpush1.bf16.msra.mxu0 %v1789
        %2146 = vmatprep.mubr.bf16.mxu0 %v1070
        %2147 = vmatmul.mubr.bf16.gmra.mrb[0].mxu0 %v1069
        %v2148 = vpop.f32.mrb[0].mxu0
        %v2149 = vadd.f32 %v1956, %v2148
        %v2150 = vpop.f32.mrb[0].mxu0
        %v2151 = vadd.f32 %v1958, %v2150
        %v2152 = vpop.f32.mrb[0].mxu0
        %v2153 = vadd.f32 %v1960, %v2152
        %v2154 = vpop.f32.mrb[0].mxu0
        %v2155 = vadd.f32 %v1962, %v2154
        %2156 = vmatprep.mubr.bf16.mxu0 %v1074
        %2157 = vmatmul.mubr.bf16.gmra.mrb[0].mxu0 %v1073
        %v2158 = vpop.f32.mrb[0].mxu0
        %v2159 = vadd.f32 %v1966, %v2158
        %v2160 = vpop.f32.mrb[0].mxu0
        %v2161 = vadd.f32 %v1968, %v2160
        %v2162 = vpop.f32.mrb[0].mxu0
        %v2163 = vadd.f32 %v1970, %v2162
        %v2164 = vpop.f32.mrb[0].mxu0
        %v2165 = vadd.f32 %v1972, %v2164
        %2166 = vmatprep.mubr.bf16.mxu0 %v1078
        %2167 = vmatmul.mubr.bf16.gmra.mrb[0].mxu0 %v1077
        %v2168 = vpop.f32.mrb[0].mxu0
        %v2169 = vadd.f32 %v1976, %v2168
        %v2170 = vpop.f32.mrb[0].mxu0
        %v2171 = vadd.f32 %v1978, %v2170
        %v2172 = vpop.f32.mrb[0].mxu0
        %v2173 = vadd.f32 %v1980, %v2172
        %v2174 = vpop.f32.mrb[0].mxu0
        %v2175 = vadd.f32 %v1982, %v2174
        %2176 = vmatprep.mubr.bf16.mxu0 %v1082
        %2177 = vmatmul.mubr.bf16.gmra.mrb[0].mxu0 %v1081
        %v2178 = vpop.f32.mrb[0].mxu0
        %v2179 = vadd.f32 %v1986, %v2178
        %v2180 = vpop.f32.mrb[0].mxu0
        %v2181 = vadd.f32 %v1988, %v2180
        %v2182 = vpop.f32.mrb[0].mxu0
        %v2183 = vadd.f32 %v1990, %v2182
        %v2184 = vpop.f32.mrb[0].mxu0
        %v2185 = vadd.f32 %v1992, %v2184
        %2186 = vmatprep.mubr.bf16.mxu0 %v1086
        %2187 = vmatmul.mubr.bf16.gmra.mrb[0].mxu0 %v1085
        %v2188 = vpop.f32.mrb[0].mxu0
        %v2189 = vadd.f32 %v1996, %v2188
        %v2190 = vpop.f32.mrb[0].mxu0
        %v2191 = vadd.f32 %v1998, %v2190
        %v2192 = vpop.f32.mrb[0].mxu0
        %v2193 = vadd.f32 %v2000, %v2192
        %v2194 = vpop.f32.mrb[0].mxu0
        %v2195 = vadd.f32 %v2002, %v2194
        %2196 = vmatprep.mubr.bf16.mxu0 %v1090
        %2197 = vmatmul.mubr.bf16.gmra.mrb[0].mxu0 %v1089
        %v2198 = vpop.f32.mrb[0].mxu0
        %v2199 = vadd.f32 %v2006, %v2198
        %v2200 = vpop.f32.mrb[0].mxu0
        %v2201 = vadd.f32 %v2008, %v2200
        %v2202 = vpop.f32.mrb[0].mxu0
        %v2203 = vadd.f32 %v2010, %v2202
        %v2204 = vpop.f32.mrb[0].mxu0
        %v2205 = vadd.f32 %v2012, %v2204
        %2206 = vmatprep.mubr.bf16.mxu0 %v1094
        %2207 = vmatmul.mubr.bf16.gmra.mrb[0].mxu0 %v1093
        %v2208 = vpop.f32.mrb[0].mxu0
        %v2209 = vadd.f32 %v2016, %v2208
        %v2210 = vpop.f32.mrb[0].mxu0
        %v2211 = vadd.f32 %v2018, %v2210
        %v2212 = vpop.f32.mrb[0].mxu0
        %v2213 = vadd.f32 %v2020, %v2212
        %v2214 = vpop.f32.mrb[0].mxu0
        %v2215 = vadd.f32 %v2022, %v2214
        %2216 = vmatprep.mubr.bf16.mxu0 %v1098
        %2217 = vmatmul.mubr.bf16.gmra.mrb[0].mxu0 %v1097
        %v2218 = vpop.f32.mrb[0].mxu0
        %v2219 = vadd.f32 %v2026, %v2218
        %v2220 = vpop.f32.mrb[0].mxu0
        %v2221 = vadd.f32 %v2028, %v2220
        %v2222 = vpop.f32.mrb[0].mxu0
        %v2223 = vadd.f32 %v2030, %v2222
        %v2224 = vpop.f32.mrb[0].mxu0
        %v2225 = vadd.f32 %v2032, %v2224
        %2226 = vmatprep.mubr.bf16.mxu0 %v1102
        %2227 = vmatmul.mubr.bf16.gmra.mrb[0].mxu0 %v1101
        %v2228 = vpop.f32.mrb[0].mxu0
        %v2229 = vadd.f32 %v2036, %v2228
        %v2230 = vpop.f32.mrb[0].mxu0
        %v2231 = vadd.f32 %v2038, %v2230
        %v2232 = vpop.f32.mrb[0].mxu0
        %v2233 = vadd.f32 %v2040, %v2232
        %v2234 = vpop.f32.mrb[0].mxu0
        %v2235 = vadd.f32 %v2042, %v2234
        %2236 = vmatprep.mubr.bf16.mxu0 %v1106
        %2237 = vmatmul.mubr.bf16.gmra.mrb[0].mxu0 %v1105
        %v2238 = vpop.f32.mrb[0].mxu0
        %v2239 = vadd.f32 %v2046, %v2238
        %v2240 = vpop.f32.mrb[0].mxu0
        %v2241 = vadd.f32 %v2048, %v2240
        %v2242 = vpop.f32.mrb[0].mxu0
        %v2243 = vadd.f32 %v2050, %v2242
        %v2244 = vpop.f32.mrb[0].mxu0
        %v2245 = vadd.f32 %v2052, %v2244
        %2246 = vmatprep.mubr.bf16.mxu0 %v1110
        %2247 = vmatmul.mubr.bf16.gmra.mrb[0].mxu0 %v1109
        %v2248 = vpop.f32.mrb[0].mxu0
        %v2249 = vadd.f32 %v2056, %v2248
        %v2250 = vpop.f32.mrb[0].mxu0
        %v2251 = vadd.f32 %v2058, %v2250
        %v2252 = vpop.f32.mrb[0].mxu0
        %v2253 = vadd.f32 %v2060, %v2252
        %v2254 = vpop.f32.mrb[0].mxu0
        %v2255 = vadd.f32 %v2062, %v2254
        %2256 = vmatprep.mubr.bf16.mxu0 %v1114
        %2257 = vmatmul.mubr.bf16.gmra.mrb[0].mxu0 %v1113
        %v2258 = vpop.f32.mrb[0].mxu0
        %v2259 = vadd.f32 %v2066, %v2258
        %v2260 = vpop.f32.mrb[0].mxu0
        %v2261 = vadd.f32 %v2068, %v2260
        %v2262 = vpop.f32.mrb[0].mxu0
        %v2263 = vadd.f32 %v2070, %v2262
        %v2264 = vpop.f32.mrb[0].mxu0
        %v2265 = vadd.f32 %v2072, %v2264
        %2266 = vmatprep.mubr.bf16.mxu0 %v1118
        %2267 = vmatmul.mubr.bf16.gmra.mrb[0].mxu0 %v1117
        %v2268 = vpop.f32.mrb[0].mxu0
        %v2269 = vadd.f32 %v2076, %v2268
        %v2270 = vpop.f32.mrb[0].mxu0
        %v2271 = vadd.f32 %v2078, %v2270
        %v2272 = vpop.f32.mrb[0].mxu0
        %v2273 = vadd.f32 %v2080, %v2272
        %v2274 = vpop.f32.mrb[0].mxu0
        %v2275 = vadd.f32 %v2082, %v2274
        %2276 = vmatprep.mubr.bf16.mxu0 %v1122
        %2277 = vmatmul.mubr.bf16.gmra.mrb[0].mxu0 %v1121
        %v2278 = vpop.f32.mrb[0].mxu0
        %v2279 = vadd.f32 %v2086, %v2278
        %v2280 = vpop.f32.mrb[0].mxu0
        %v2281 = vadd.f32 %v2088, %v2280
        %v2282 = vpop.f32.mrb[0].mxu0
        %v2283 = vadd.f32 %v2090, %v2282
        %v2284 = vpop.f32.mrb[0].mxu0
        %v2285 = vadd.f32 %v2092, %v2284
        %2286 = vmatprep.mubr.bf16.mxu0 %v1126
        %2287 = vmatmul.mubr.bf16.gmra.mrb[0].mxu0 %v1125
        %v2288 = vpop.f32.mrb[0].mxu0
        %v2289 = vadd.f32 %v2096, %v2288
        %v2290 = vpop.f32.mrb[0].mxu0
        %v2291 = vadd.f32 %v2098, %v2290
        %v2292 = vpop.f32.mrb[0].mxu0
        %v2293 = vadd.f32 %v2100, %v2292
        %v2294 = vpop.f32.mrb[0].mxu0
        %v2295 = vadd.f32 %v2102, %v2294
        %2296 = vmatprep.mubr.bf16.mxu0 %v1130
        %2297 = vmatmul.mubr.bf16.gmra.mrb[0].mxu0 %v1129
        %v2298 = vpop.f32.mrb[0].mxu0
        %v2299 = vadd.f32 %v2106, %v2298
        %v2300 = vpop.f32.mrb[0].mxu0
        %v2301 = vadd.f32 %v2108, %v2300
        %v2302 = vpop.f32.mrb[0].mxu0
        %v2303 = vadd.f32 %v2110, %v2302
        %v2304 = vpop.f32.mrb[0].mxu0
        %v2305 = vadd.f32 %v2112, %v2304
        %2306 = vdwg.mxu0
        %2307 = vmatprep.subr.bf16.mxu0 %v1668
        %2308 = vmatpush1.bf16.msra.mxu0 %v1667
        %2309 = vmatprep.subr.bf16.mxu0 %v1672
        %2310 = vmatpush1.bf16.msra.mxu0 %v1671
        %2311 = vmatprep.subr.bf16.mxu0 %v1676
        %2312 = vmatpush1.bf16.msra.mxu0 %v1675
        %2313 = vmatprep.subr.bf16.mxu0 %v1680
        %2314 = vmatpush1.bf16.msra.mxu0 %v1679
        %2315 = vmatprep.subr.bf16.mxu0 %v1684
        %2316 = vmatpush1.bf16.msra.mxu0 %v1683
        %2317 = vmatprep.subr.bf16.mxu0 %v1688
        %2318 = vmatpush1.bf16.msra.mxu0 %v1687
        %2319 = vmatprep.subr.bf16.mxu0 %v1692
        %2320 = vmatpush1.bf16.msra.mxu0 %v1691
        %2321 = vmatprep.subr.bf16.mxu0 %v1696
        %2322 = vmatpush1.bf16.msra.mxu0 %v1695
        %2323 = vmatprep.subr.bf16.mxu0 %v1700
        %2324 = vmatpush1.bf16.msra.mxu0 %v1699
        %2325 = vmatprep.subr.bf16.mxu0 %v1704
        %2326 = vmatpush1.bf16.msra.mxu0 %v1703
        %2327 = vmatprep.subr.bf16.mxu0 %v1708
        %2328 = vmatpush1.bf16.msra.mxu0 %v1707
        %2329 = vmatprep.subr.bf16.mxu0 %v1712
        %2330 = vmatpush1.bf16.msra.mxu0 %v1711
        %2331 = vmatprep.subr.bf16.mxu0 %v1716
        %2332 = vmatpush1.bf16.msra.mxu0 %v1715
        %2333 = vmatprep.subr.bf16.mxu0 %v1720
        %2334 = vmatpush1.bf16.msra.mxu0 %v1719
        %2335 = vmatprep.subr.bf16.mxu0 %v1724
        %2336 = vmatpush1.bf16.msra.mxu0 %v1723
        %2337 = vmatprep.subr.bf16.mxu0 %v1728
        %2338 = vmatpush1.bf16.msra.mxu0 %v1727
        %2339 = vmatprep.mubr.bf16.mxu0 %v1068
        %2340 = vmatmul.mubr.bf16.gmra.mrb[0].mxu0 %v1067
        %v2341 = vpop.f32.mrb[0].mxu0
        %v2342 = vadd.f32 %v1272, %v2341
        %v2343 = vpop.f32.mrb[0].mxu0
        %v2344 = vadd.f32 %v1276, %v2343
        %v2345 = vpop.f32.mrb[0].mxu0
        %v2346 = vadd.f32 %v1272, %v2345
        %v2347 = vpop.f32.mrb[0].mxu0
        %v2348 = vadd.f32 %v1276, %v2347
        %2349 = vmatprep.mubr.bf16.mxu0 %v1072
        %2350 = vmatmul.mubr.bf16.gmra.mrb[0].mxu0 %v1071
        %v2351 = vpop.f32.mrb[0].mxu0
        %v2352 = vadd.f32 %v1272, %v2351
        %v2353 = vpop.f32.mrb[0].mxu0
        %v2354 = vadd.f32 %v1276, %v2353
        %v2355 = vpop.f32.mrb[0].mxu0
        %v2356 = vadd.f32 %v1272, %v2355
        %v2357 = vpop.f32.mrb[0].mxu0
        %v2358 = vadd.f32 %v1276, %v2357
        %2359 = vmatprep.mubr.bf16.mxu0 %v1076
        %2360 = vmatmul.mubr.bf16.gmra.mrb[0].mxu0 %v1075
        %v2361 = vpop.f32.mrb[0].mxu0
        %v2362 = vadd.f32 %v1272, %v2361
        %v2363 = vpop.f32.mrb[0].mxu0
        %v2364 = vadd.f32 %v1276, %v2363
        %v2365 = vpop.f32.mrb[0].mxu0
        %v2366 = vadd.f32 %v1272, %v2365
        %v2367 = vpop.f32.mrb[0].mxu0
        %v2368 = vadd.f32 %v1276, %v2367
        %2369 = vmatprep.mubr.bf16.mxu0 %v1080
        %2370 = vmatmul.mubr.bf16.gmra.mrb[0].mxu0 %v1079
        %v2371 = vpop.f32.mrb[0].mxu0
        %v2372 = vadd.f32 %v1272, %v2371
        %v2373 = vpop.f32.mrb[0].mxu0
        %v2374 = vadd.f32 %v1276, %v2373
        %v2375 = vpop.f32.mrb[0].mxu0
        %v2376 = vadd.f32 %v1272, %v2375
        %v2377 = vpop.f32.mrb[0].mxu0
        %v2378 = vadd.f32 %v1276, %v2377
        %2379 = vmatprep.mubr.bf16.mxu0 %v1084
        %2380 = vmatmul.mubr.bf16.gmra.mrb[0].mxu0 %v1083
        %v2381 = vpop.f32.mrb[0].mxu0
        %v2382 = vadd.f32 %v1272, %v2381
        %v2383 = vpop.f32.mrb[0].mxu0
        %v2384 = vadd.f32 %v1276, %v2383
        %v2385 = vpop.f32.mrb[0].mxu0
        %v2386 = vadd.f32 %v1272, %v2385
        %v2387 = vpop.f32.mrb[0].mxu0
        %v2388 = vadd.f32 %v1276, %v2387
        %2389 = vmatprep.mubr.bf16.mxu0 %v1088
        %2390 = vmatmul.mubr.bf16.gmra.mrb[0].mxu0 %v1087
        %v2391 = vpop.f32.mrb[0].mxu0
        %v2392 = vadd.f32 %v1272, %v2391
        %v2393 = vpop.f32.mrb[0].mxu0
        %v2394 = vadd.f32 %v1276, %v2393
        %v2395 = vpop.f32.mrb[0].mxu0
        %v2396 = vadd.f32 %v1272, %v2395
        %v2397 = vpop.f32.mrb[0].mxu0
        %v2398 = vadd.f32 %v1276, %v2397
        %2399 = vmatprep.mubr.bf16.mxu0 %v1092
        %2400 = vmatmul.mubr.bf16.gmra.mrb[0].mxu0 %v1091
        %v2401 = vpop.f32.mrb[0].mxu0
        %v2402 = vadd.f32 %v1272, %v2401
        %v2403 = vpop.f32.mrb[0].mxu0
        %v2404 = vadd.f32 %v1276, %v2403
        %v2405 = vpop.f32.mrb[0].mxu0
        %v2406 = vadd.f32 %v1272, %v2405
        %v2407 = vpop.f32.mrb[0].mxu0
        %v2408 = vadd.f32 %v1276, %v2407
        %2409 = vmatprep.mubr.bf16.mxu0 %v1096
        %2410 = vmatmul.mubr.bf16.gmra.mrb[0].mxu0 %v1095
        %v2411 = vpop.f32.mrb[0].mxu0
        %v2412 = vadd.f32 %v1272, %v2411
        %v2413 = vpop.f32.mrb[0].mxu0
        %v2414 = vadd.f32 %v1276, %v2413
        %v2415 = vpop.f32.mrb[0].mxu0
        %v2416 = vadd.f32 %v1272, %v2415
        %v2417 = vpop.f32.mrb[0].mxu0
        %v2418 = vadd.f32 %v1276, %v2417
        %2419 = vmatprep.mubr.bf16.mxu0 %v1100
        %2420 = vmatmul.mubr.bf16.gmra.mrb[0].mxu0 %v1099
        %v2421 = vpop.f32.mrb[0].mxu0
        %v2422 = vadd.f32 %v1272, %v2421
        %v2423 = vpop.f32.mrb[0].mxu0
        %v2424 = vadd.f32 %v1276, %v2423
        %v2425 = vpop.f32.mrb[0].mxu0
        %v2426 = vadd.f32 %v1272, %v2425
        %v2427 = vpop.f32.mrb[0].mxu0
        %v2428 = vadd.f32 %v1276, %v2427
        %2429 = vmatprep.mubr.bf16.mxu0 %v1104
        %2430 = vmatmul.mubr.bf16.gmra.mrb[0].mxu0 %v1103
        %v2431 = vpop.f32.mrb[0].mxu0
        %v2432 = vadd.f32 %v1272, %v2431
        %v2433 = vpop.f32.mrb[0].mxu0
        %v2434 = vadd.f32 %v1276, %v2433
        %v2435 = vpop.f32.mrb[0].mxu0
        %v2436 = vadd.f32 %v1272, %v2435
        %v2437 = vpop.f32.mrb[0].mxu0
        %v2438 = vadd.f32 %v1276, %v2437
        %2439 = vmatprep.mubr.bf16.mxu0 %v1108
        %2440 = vmatmul.mubr.bf16.gmra.mrb[0].mxu0 %v1107
        %v2441 = vpop.f32.mrb[0].mxu0
        %v2442 = vadd.f32 %v1272, %v2441
        %v2443 = vpop.f32.mrb[0].mxu0
        %v2444 = vadd.f32 %v1276, %v2443
        %v2445 = vpop.f32.mrb[0].mxu0
        %v2446 = vadd.f32 %v1272, %v2445
        %v2447 = vpop.f32.mrb[0].mxu0
        %v2448 = vadd.f32 %v1276, %v2447
        %2449 = vmatprep.mubr.bf16.mxu0 %v1112
        %2450 = vmatmul.mubr.bf16.gmra.mrb[0].mxu0 %v1111
        %v2451 = vpop.f32.mrb[0].mxu0
        %v2452 = vadd.f32 %v1272, %v2451
        %v2453 = vpop.f32.mrb[0].mxu0
        %v2454 = vadd.f32 %v1276, %v2453
        %v2455 = vpop.f32.mrb[0].mxu0
        %v2456 = vadd.f32 %v1272, %v2455
        %v2457 = vpop.f32.mrb[0].mxu0
        %v2458 = vadd.f32 %v1276, %v2457
        %2459 = vmatprep.mubr.bf16.mxu0 %v1116
        %2460 = vmatmul.mubr.bf16.gmra.mrb[0].mxu0 %v1115
        %v2461 = vpop.f32.mrb[0].mxu0
        %v2462 = vadd.f32 %v1272, %v2461
        %v2463 = vpop.f32.mrb[0].mxu0
        %v2464 = vadd.f32 %v1276, %v2463
        %v2465 = vpop.f32.mrb[0].mxu0
        %v2466 = vadd.f32 %v1272, %v2465
        %v2467 = vpop.f32.mrb[0].mxu0
        %v2468 = vadd.f32 %v1276, %v2467
        %2469 = vmatprep.mubr.bf16.mxu0 %v1120
        %2470 = vmatmul.mubr.bf16.gmra.mrb[0].mxu0 %v1119
        %v2471 = vpop.f32.mrb[0].mxu0
        %v2472 = vadd.f32 %v1272, %v2471
        %v2473 = vpop.f32.mrb[0].mxu0
        %v2474 = vadd.f32 %v1276, %v2473
        %v2475 = vpop.f32.mrb[0].mxu0
        %v2476 = vadd.f32 %v1272, %v2475
        %v2477 = vpop.f32.mrb[0].mxu0
        %v2478 = vadd.f32 %v1276, %v2477
        %2479 = vmatprep.mubr.bf16.mxu0 %v1124
        %2480 = vmatmul.mubr.bf16.gmra.mrb[0].mxu0 %v1123
        %v2481 = vpop.f32.mrb[0].mxu0
        %v2482 = vadd.f32 %v1272, %v2481
        %v2483 = vpop.f32.mrb[0].mxu0
        %v2484 = vadd.f32 %v1276, %v2483
        %v2485 = vpop.f32.mrb[0].mxu0
        %v2486 = vadd.f32 %v1272, %v2485
        %v2487 = vpop.f32.mrb[0].mxu0
        %v2488 = vadd.f32 %v1276, %v2487
        %2489 = vmatprep.mubr.bf16.mxu0 %v1128
        %2490 = vmatmul.mubr.bf16.gmra.mrb[0].mxu0 %v1127
        %v2491 = vpop.f32.mrb[0].mxu0
        %v2492 = vadd.f32 %v1272, %v2491
        %v2493 = vpop.f32.mrb[0].mxu0
        %v2494 = vadd.f32 %v1276, %v2493
        %v2495 = vpop.f32.mrb[0].mxu0
        %v2496 = vadd.f32 %v1272, %v2495
        %v2497 = vpop.f32.mrb[0].mxu0
        %v2498 = vadd.f32 %v1276, %v2497
        %2499 = vdwg.mxu0
        %2500 = vmatprep.subr.bf16.mxu0 %v1732
        %2501 = vmatpush1.bf16.msra.mxu0 %v1731
        %2502 = vmatprep.subr.bf16.mxu0 %v1736
        %2503 = vmatpush1.bf16.msra.mxu0 %v1735
        %2504 = vmatprep.subr.bf16.mxu0 %v1740
        %2505 = vmatpush1.bf16.msra.mxu0 %v1739
        %2506 = vmatprep.subr.bf16.mxu0 %v1744
        %2507 = vmatpush1.bf16.msra.mxu0 %v1743
        %2508 = vmatprep.subr.bf16.mxu0 %v1748
        %2509 = vmatpush1.bf16.msra.mxu0 %v1747
        %2510 = vmatprep.subr.bf16.mxu0 %v1752
        %2511 = vmatpush1.bf16.msra.mxu0 %v1751
        %2512 = vmatprep.subr.bf16.mxu0 %v1756
        %2513 = vmatpush1.bf16.msra.mxu0 %v1755
        %2514 = vmatprep.subr.bf16.mxu0 %v1760
        %2515 = vmatpush1.bf16.msra.mxu0 %v1759
        %2516 = vmatprep.subr.bf16.mxu0 %v1764
        %2517 = vmatpush1.bf16.msra.mxu0 %v1763
        %2518 = vmatprep.subr.bf16.mxu0 %v1768
        %2519 = vmatpush1.bf16.msra.mxu0 %v1767
        %2520 = vmatprep.subr.bf16.mxu0 %v1772
        %2521 = vmatpush1.bf16.msra.mxu0 %v1771
        %2522 = vmatprep.subr.bf16.mxu0 %v1776
        %2523 = vmatpush1.bf16.msra.mxu0 %v1775
        %2524 = vmatprep.subr.bf16.mxu0 %v1780
        %2525 = vmatpush1.bf16.msra.mxu0 %v1779
        %2526 = vmatprep.subr.bf16.mxu0 %v1784
        %2527 = vmatpush1.bf16.msra.mxu0 %v1783
        %2528 = vmatprep.subr.bf16.mxu0 %v1788
        %2529 = vmatpush1.bf16.msra.mxu0 %v1787
        %2530 = vmatprep.subr.bf16.mxu0 %v1792
        %2531 = vmatpush1.bf16.msra.mxu0 %v1791
        %2532 = vmatprep.mubr.bf16.mxu0 %v1070
        %2533 = vmatmul.mubr.bf16.gmra.mrb[0].mxu0 %v1069
        %v2534 = vpop.f32.mrb[0].mxu0
        %v2535 = vadd.f32 %v2342, %v2534
        %v2536 = vpop.f32.mrb[0].mxu0
        %v2537 = vadd.f32 %v2344, %v2536
        %v2538 = vpop.f32.mrb[0].mxu0
        %v2539 = vadd.f32 %v2346, %v2538
        %v2540 = vpop.f32.mrb[0].mxu0
        %v2541 = vadd.f32 %v2348, %v2540
        %2542 = vmatprep.mubr.bf16.mxu0 %v1074
        %2543 = vmatmul.mubr.bf16.gmra.mrb[0].mxu0 %v1073
        %v2544 = vpop.f32.mrb[0].mxu0
        %v2545 = vadd.f32 %v2352, %v2544
        %v2546 = vpop.f32.mrb[0].mxu0
        %v2547 = vadd.f32 %v2354, %v2546
        %v2548 = vpop.f32.mrb[0].mxu0
        %v2549 = vadd.f32 %v2356, %v2548
        %v2550 = vpop.f32.mrb[0].mxu0
        %v2551 = vadd.f32 %v2358, %v2550
        %2552 = vmatprep.mubr.bf16.mxu0 %v1078
        %2553 = vmatmul.mubr.bf16.gmra.mrb[0].mxu0 %v1077
        %v2554 = vpop.f32.mrb[0].mxu0
        %v2555 = vadd.f32 %v2362, %v2554
        %v2556 = vpop.f32.mrb[0].mxu0
        %v2557 = vadd.f32 %v2364, %v2556
        %v2558 = vpop.f32.mrb[0].mxu0
        %v2559 = vadd.f32 %v2366, %v2558
        %v2560 = vpop.f32.mrb[0].mxu0
        %v2561 = vadd.f32 %v2368, %v2560
        %2562 = vmatprep.mubr.bf16.mxu0 %v1082
        %2563 = vmatmul.mubr.bf16.gmra.mrb[0].mxu0 %v1081
        %v2564 = vpop.f32.mrb[0].mxu0
        %v2565 = vadd.f32 %v2372, %v2564
        %v2566 = vpop.f32.mrb[0].mxu0
        %v2567 = vadd.f32 %v2374, %v2566
        %v2568 = vpop.f32.mrb[0].mxu0
        %v2569 = vadd.f32 %v2376, %v2568
        %v2570 = vpop.f32.mrb[0].mxu0
        %v2571 = vadd.f32 %v2378, %v2570
        %2572 = vmatprep.mubr.bf16.mxu0 %v1086
        %2573 = vmatmul.mubr.bf16.gmra.mrb[0].mxu0 %v1085
        %v2574 = vpop.f32.mrb[0].mxu0
        %v2575 = vadd.f32 %v2382, %v2574
        %v2576 = vpop.f32.mrb[0].mxu0
        %v2577 = vadd.f32 %v2384, %v2576
        %v2578 = vpop.f32.mrb[0].mxu0
        %v2579 = vadd.f32 %v2386, %v2578
        %v2580 = vpop.f32.mrb[0].mxu0
        %v2581 = vadd.f32 %v2388, %v2580
        %2582 = vmatprep.mubr.bf16.mxu0 %v1090
        %2583 = vmatmul.mubr.bf16.gmra.mrb[0].mxu0 %v1089
        %v2584 = vpop.f32.mrb[0].mxu0
        %v2585 = vadd.f32 %v2392, %v2584
        %v2586 = vpop.f32.mrb[0].mxu0
        %v2587 = vadd.f32 %v2394, %v2586
        %v2588 = vpop.f32.mrb[0].mxu0
        %v2589 = vadd.f32 %v2396, %v2588
        %v2590 = vpop.f32.mrb[0].mxu0
        %v2591 = vadd.f32 %v2398, %v2590
        %2592 = vmatprep.mubr.bf16.mxu0 %v1094
        %2593 = vmatmul.mubr.bf16.gmra.mrb[0].mxu0 %v1093
        %v2594 = vpop.f32.mrb[0].mxu0
        %v2595 = vadd.f32 %v2402, %v2594
        %v2596 = vpop.f32.mrb[0].mxu0
        %v2597 = vadd.f32 %v2404, %v2596
        %v2598 = vpop.f32.mrb[0].mxu0
        %v2599 = vadd.f32 %v2406, %v2598
        %v2600 = vpop.f32.mrb[0].mxu0
        %v2601 = vadd.f32 %v2408, %v2600
        %2602 = vmatprep.mubr.bf16.mxu0 %v1098
        %2603 = vmatmul.mubr.bf16.gmra.mrb[0].mxu0 %v1097
        %v2604 = vpop.f32.mrb[0].mxu0
        %v2605 = vadd.f32 %v2412, %v2604
        %v2606 = vpop.f32.mrb[0].mxu0
        %v2607 = vadd.f32 %v2414, %v2606
        %v2608 = vpop.f32.mrb[0].mxu0
        %v2609 = vadd.f32 %v2416, %v2608
        %v2610 = vpop.f32.mrb[0].mxu0
        %v2611 = vadd.f32 %v2418, %v2610
        %2612 = vmatprep.mubr.bf16.mxu0 %v1102
        %2613 = vmatmul.mubr.bf16.gmra.mrb[0].mxu0 %v1101
        %v2614 = vpop.f32.mrb[0].mxu0
        %v2615 = vadd.f32 %v2422, %v2614
        %v2616 = vpop.f32.mrb[0].mxu0
        %v2617 = vadd.f32 %v2424, %v2616
        %v2618 = vpop.f32.mrb[0].mxu0
        %v2619 = vadd.f32 %v2426, %v2618
        %v2620 = vpop.f32.mrb[0].mxu0
        %v2621 = vadd.f32 %v2428, %v2620
        %2622 = vmatprep.mubr.bf16.mxu0 %v1106
        %2623 = vmatmul.mubr.bf16.gmra.mrb[0].mxu0 %v1105
        %v2624 = vpop.f32.mrb[0].mxu0
        %v2625 = vadd.f32 %v2432, %v2624
        %v2626 = vpop.f32.mrb[0].mxu0
        %v2627 = vadd.f32 %v2434, %v2626
        %v2628 = vpop.f32.mrb[0].mxu0
        %v2629 = vadd.f32 %v2436, %v2628
        %v2630 = vpop.f32.mrb[0].mxu0
        %v2631 = vadd.f32 %v2438, %v2630
        %2632 = vmatprep.mubr.bf16.mxu0 %v1110
        %2633 = vmatmul.mubr.bf16.gmra.mrb[0].mxu0 %v1109
        %v2634 = vpop.f32.mrb[0].mxu0
        %v2635 = vadd.f32 %v2442, %v2634
        %v2636 = vpop.f32.mrb[0].mxu0
        %v2637 = vadd.f32 %v2444, %v2636
        %v2638 = vpop.f32.mrb[0].mxu0
        %v2639 = vadd.f32 %v2446, %v2638
        %v2640 = vpop.f32.mrb[0].mxu0
        %v2641 = vadd.f32 %v2448, %v2640
        %2642 = vmatprep.mubr.bf16.mxu0 %v1114
        %2643 = vmatmul.mubr.bf16.gmra.mrb[0].mxu0 %v1113
        %v2644 = vpop.f32.mrb[0].mxu0
        %v2645 = vadd.f32 %v2452, %v2644
        %v2646 = vpop.f32.mrb[0].mxu0
        %v2647 = vadd.f32 %v2454, %v2646
        %v2648 = vpop.f32.mrb[0].mxu0
        %v2649 = vadd.f32 %v2456, %v2648
        %v2650 = vpop.f32.mrb[0].mxu0
        %v2651 = vadd.f32 %v2458, %v2650
        %2652 = vmatprep.mubr.bf16.mxu0 %v1118
        %2653 = vmatmul.mubr.bf16.gmra.mrb[0].mxu0 %v1117
        %v2654 = vpop.f32.mrb[0].mxu0
        %v2655 = vadd.f32 %v2462, %v2654
        %v2656 = vpop.f32.mrb[0].mxu0
        %v2657 = vadd.f32 %v2464, %v2656
        %v2658 = vpop.f32.mrb[0].mxu0
        %v2659 = vadd.f32 %v2466, %v2658
        %v2660 = vpop.f32.mrb[0].mxu0
        %v2661 = vadd.f32 %v2468, %v2660
        %2662 = vmatprep.mubr.bf16.mxu0 %v1122
        %2663 = vmatmul.mubr.bf16.gmra.mrb[0].mxu0 %v1121
        %v2664 = vpop.f32.mrb[0].mxu0
        %v2665 = vadd.f32 %v2472, %v2664
        %v2666 = vpop.f32.mrb[0].mxu0
        %v2667 = vadd.f32 %v2474, %v2666
        %v2668 = vpop.f32.mrb[0].mxu0
        %v2669 = vadd.f32 %v2476, %v2668
        %v2670 = vpop.f32.mrb[0].mxu0
        %v2671 = vadd.f32 %v2478, %v2670
        %2672 = vmatprep.mubr.bf16.mxu0 %v1126
        %2673 = vmatmul.mubr.bf16.gmra.mrb[0].mxu0 %v1125
        %v2674 = vpop.f32.mrb[0].mxu0
        %v2675 = vadd.f32 %v2482, %v2674
        %v2676 = vpop.f32.mrb[0].mxu0
        %v2677 = vadd.f32 %v2484, %v2676
        %v2678 = vpop.f32.mrb[0].mxu0
        %v2679 = vadd.f32 %v2486, %v2678
        %v2680 = vpop.f32.mrb[0].mxu0
        %v2681 = vadd.f32 %v2488, %v2680
        %2682 = vmatprep.mubr.bf16.mxu0 %v1130
        %2683 = vmatmul.mubr.bf16.gmra.mrb[0].mxu0 %v1129
        %v2684 = vpop.f32.mrb[0].mxu0
        %v2685 = vadd.f32 %v2492, %v2684
        %v2686 = vpop.f32.mrb[0].mxu0
        %v2687 = vadd.f32 %v2494, %v2686
        %v2688 = vpop.f32.mrb[0].mxu0
        %v2689 = vadd.f32 %v2496, %v2688
        %v2690 = vpop.f32.mrb[0].mxu0
        %v2691 = vadd.f32 %v2498, %v2690
        %2692 = vdwg.mxu0
        %v2693 = vmax.f32 %v2149, 0.0
        %v2694 = vmax.f32 %v2151, 0.0
        %v2695 = vmax.f32 %v2535, 0.0
        %v2696 = vmax.f32 %v2537, 0.0
        %v2697 = vmax.f32 %v2153, 0.0
        %v2698 = vmax.f32 %v2155, 0.0
        %v2699 = vmax.f32 %v2539, 0.0
        %v2700 = vmax.f32 %v2541, 0.0
        %v2701 = vmax.f32 %v2159, 0.0
        %v2702 = vmax.f32 %v2161, 0.0
        %v2703 = vmax.f32 %v2545, 0.0
        %v2704 = vmax.f32 %v2547, 0.0
        %v2705 = vmax.f32 %v2163, 0.0
        %v2706 = vmax.f32 %v2165, 0.0
        %v2707 = vmax.f32 %v2549, 0.0
        %v2708 = vmax.f32 %v2551, 0.0
        %v2709 = vmax.f32 %v2169, 0.0
        %v2710 = vmax.f32 %v2171, 0.0
        %v2711 = vmax.f32 %v2555, 0.0
        %v2712 = vmax.f32 %v2557, 0.0
        %v2713 = vmax.f32 %v2173, 0.0
        %v2714 = vmax.f32 %v2175, 0.0
        %v2715 = vmax.f32 %v2559, 0.0
        %v2716 = vmax.f32 %v2561, 0.0
        %v2717 = vmax.f32 %v2179, 0.0
        %v2718 = vmax.f32 %v2181, 0.0
        %v2719 = vmax.f32 %v2565, 0.0
        %v2720 = vmax.f32 %v2567, 0.0
        %v2721 = vmax.f32 %v2183, 0.0
        %v2722 = vmax.f32 %v2185, 0.0
        %v2723 = vmax.f32 %v2569, 0.0
        %v2724 = vmax.f32 %v2571, 0.0
        %v2725 = vmax.f32 %v2189, 0.0
        %v2726 = vmax.f32 %v2191, 0.0
        %v2727 = vmax.f32 %v2575, 0.0
        %v2728 = vmax.f32 %v2577, 0.0
        %v2729 = vmax.f32 %v2193, 0.0
        %v2730 = vmax.f32 %v2195, 0.0
        %v2731 = vmax.f32 %v2579, 0.0
        %v2732 = vmax.f32 %v2581, 0.0
        %v2733 = vmax.f32 %v2199, 0.0
        %v2734 = vmax.f32 %v2201, 0.0
        %v2735 = vmax.f32 %v2585, 0.0
        %v2736 = vmax.f32 %v2587, 0.0
        %v2737 = vmax.f32 %v2203, 0.0
        %v2738 = vmax.f32 %v2205, 0.0
        %v2739 = vmax.f32 %v2589, 0.0
        %v2740 = vmax.f32 %v2591, 0.0
        %v2741 = vmax.f32 %v2209, 0.0
        %v2742 = vmax.f32 %v2211, 0.0
        %v2743 = vmax.f32 %v2595, 0.0
        %v2744 = vmax.f32 %v2597, 0.0
        %v2745 = vmax.f32 %v2213, 0.0
        %v2746 = vmax.f32 %v2215, 0.0
        %v2747 = vmax.f32 %v2599, 0.0
        %v2748 = vmax.f32 %v2601, 0.0
        %v2749 = vmax.f32 %v2219, 0.0
        %v2750 = vmax.f32 %v2221, 0.0
        %v2751 = vmax.f32 %v2605, 0.0
        %v2752 = vmax.f32 %v2607, 0.0
        %v2753 = vmax.f32 %v2223, 0.0
        %v2754 = vmax.f32 %v2225, 0.0
        %v2755 = vmax.f32 %v2609, 0.0
        %v2756 = vmax.f32 %v2611, 0.0
        %v2757 = vmax.f32 %v2229, 0.0
        %v2758 = vmax.f32 %v2231, 0.0
        %v2759 = vmax.f32 %v2615, 0.0
        %v2760 = vmax.f32 %v2617, 0.0
        %v2761 = vmax.f32 %v2233, 0.0
        %v2762 = vmax.f32 %v2235, 0.0
        %v2763 = vmax.f32 %v2619, 0.0
        %v2764 = vmax.f32 %v2621, 0.0
        %v2765 = vmax.f32 %v2239, 0.0
        %v2766 = vmax.f32 %v2241, 0.0
        %v2767 = vmax.f32 %v2625, 0.0
        %v2768 = vmax.f32 %v2627, 0.0
        %v2769 = vmax.f32 %v2243, 0.0
        %v2770 = vmax.f32 %v2245, 0.0
        %v2771 = vmax.f32 %v2629, 0.0
        %v2772 = vmax.f32 %v2631, 0.0
        %v2773 = vmax.f32 %v2249, 0.0
        %v2774 = vmax.f32 %v2251, 0.0
        %v2775 = vmax.f32 %v2635, 0.0
        %v2776 = vmax.f32 %v2637, 0.0
        %v2777 = vmax.f32 %v2253, 0.0
        %v2778 = vmax.f32 %v2255, 0.0
        %v2779 = vmax.f32 %v2639, 0.0
        %v2780 = vmax.f32 %v2641, 0.0
        %v2781 = vmax.f32 %v2259, 0.0
        %v2782 = vmax.f32 %v2261, 0.0
        %v2783 = vmax.f32 %v2645, 0.0
        %v2784 = vmax.f32 %v2647, 0.0
        %v2785 = vmax.f32 %v2263, 0.0
        %v2786 = vmax.f32 %v2265, 0.0
        %v2787 = vmax.f32 %v2649, 0.0
        %v2788 = vmax.f32 %v2651, 0.0
        %v2789 = vmax.f32 %v2269, 0.0
        %v2790 = vmax.f32 %v2271, 0.0
        %v2791 = vmax.f32 %v2655, 0.0
        %v2792 = vmax.f32 %v2657, 0.0
        %v2793 = vmax.f32 %v2273, 0.0
        %v2794 = vmax.f32 %v2275, 0.0
        %v2795 = vmax.f32 %v2659, 0.0
        %v2796 = vmax.f32 %v2661, 0.0
        %v2797 = vmax.f32 %v2279, 0.0
        %v2798 = vmax.f32 %v2281, 0.0
        %v2799 = vmax.f32 %v2665, 0.0
        %v2800 = vmax.f32 %v2667, 0.0
        %v2801 = vmax.f32 %v2283, 0.0
        %v2802 = vmax.f32 %v2285, 0.0
        %v2803 = vmax.f32 %v2669, 0.0
        %v2804 = vmax.f32 %v2671, 0.0
        %v2805 = vmax.f32 %v2289, 0.0
        %v2806 = vmax.f32 %v2291, 0.0
        %v2807 = vmax.f32 %v2675, 0.0
        %v2808 = vmax.f32 %v2677, 0.0
        %v2809 = vmax.f32 %v2293, 0.0
        %v2810 = vmax.f32 %v2295, 0.0
        %v2811 = vmax.f32 %v2679, 0.0
        %v2812 = vmax.f32 %v2681, 0.0
        %v2813 = vmax.f32 %v2299, 0.0
        %v2814 = vmax.f32 %v2301, 0.0
        %v2815 = vmax.f32 %v2685, 0.0
        %v2816 = vmax.f32 %v2687, 0.0
        %v2817 = vmax.f32 %v2303, 0.0
        %v2818 = vmax.f32 %v2305, 0.0
        %v2819 = vmax.f32 %v2689, 0.0
        %v2820 = vmax.f32 %v2691, 0.0
        %v2821 = vld [vmem:[%s5] sm:$0xf]
        %v2822 = vpack.c.bf16 %v2697, %v2693
        %v2823 = vpack.c.bf16 %v2698, %v2694
        %v2824 = vpack.c.bf16 %v2699, %v2695
        %v2825 = vpack.c.bf16 %v2700, %v2696
        %v2826 = vpack.c.bf16 %v2705, %v2701
        %v2827 = vpack.c.bf16 %v2706, %v2702
        %v2828 = vpack.c.bf16 %v2707, %v2703
        %v2829 = vpack.c.bf16 %v2708, %v2704
        %v2830 = vpack.c.bf16 %v2713, %v2709
        %v2831 = vpack.c.bf16 %v2714, %v2710
        %v2832 = vpack.c.bf16 %v2715, %v2711
        %v2833 = vpack.c.bf16 %v2716, %v2712
        %v2834 = vpack.c.bf16 %v2721, %v2717
        %v2835 = vpack.c.bf16 %v2722, %v2718
        %v2836 = vpack.c.bf16 %v2723, %v2719
        %v2837 = vpack.c.bf16 %v2724, %v2720
        %v2838 = vpack.c.bf16 %v2729, %v2725
        %v2839 = vpack.c.bf16 %v2730, %v2726
        %v2840 = vpack.c.bf16 %v2731, %v2727
        %v2841 = vpack.c.bf16 %v2732, %v2728
        %v2842 = vpack.c.bf16 %v2737, %v2733
        %v2843 = vpack.c.bf16 %v2738, %v2734
        %v2844 = vpack.c.bf16 %v2739, %v2735
        %v2845 = vpack.c.bf16 %v2740, %v2736
        %v2846 = vpack.c.bf16 %v2745, %v2741
        %v2847 = vpack.c.bf16 %v2746, %v2742
        %v2848 = vpack.c.bf16 %v2747, %v2743
        %v2849 = vpack.c.bf16 %v2748, %v2744
        %v2850 = vpack.c.bf16 %v2753, %v2749
        %v2851 = vpack.c.bf16 %v2754, %v2750
        %v2852 = vpack.c.bf16 %v2755, %v2751
        %v2853 = vpack.c.bf16 %v2756, %v2752
        %v2854 = vpack.c.bf16 %v2761, %v2757
        %v2855 = vpack.c.bf16 %v2762, %v2758
        %v2856 = vpack.c.bf16 %v2763, %v2759
        %v2857 = vpack.c.bf16 %v2764, %v2760
        %v2858 = vpack.c.bf16 %v2769, %v2765
        %v2859 = vpack.c.bf16 %v2770, %v2766
        %v2860 = vpack.c.bf16 %v2771, %v2767
        %v2861 = vpack.c.bf16 %v2772, %v2768
        %v2862 = vpack.c.bf16 %v2777, %v2773
        %v2863 = vpack.c.bf16 %v2778, %v2774
        %v2864 = vpack.c.bf16 %v2779, %v2775
        %v2865 = vpack.c.bf16 %v2780, %v2776
        %v2866 = vpack.c.bf16 %v2785, %v2781
        %v2867 = vpack.c.bf16 %v2786, %v2782
        %v2868 = vpack.c.bf16 %v2787, %v2783
        %v2869 = vpack.c.bf16 %v2788, %v2784
        %v2870 = vpack.c.bf16 %v2793, %v2789
        %v2871 = vpack.c.bf16 %v2794, %v2790
        %v2872 = vpack.c.bf16 %v2795, %v2791
        %v2873 = vpack.c.bf16 %v2796, %v2792
        %v2874 = vpack.c.bf16 %v2801, %v2797
        %v2875 = vpack.c.bf16 %v2802, %v2798
        %v2876 = vpack.c.bf16 %v2803, %v2799
        %v2877 = vpack.c.bf16 %v2804, %v2800
        %v2878 = vpack.c.bf16 %v2809, %v2805
        %v2879 = vpack.c.bf16 %v2810, %v2806
        %v2880 = vpack.c.bf16 %v2811, %v2807
        %v2881 = vpack.c.bf16 %v2812, %v2808
        %v2882 = vpack.c.bf16 %v2817, %v2813
        %v2883 = vpack.c.bf16 %v2818, %v2814
        %v2884 = vpack.c.bf16 %v2819, %v2815
        %v2885 = vpack.c.bf16 %v2820, %v2816
        %s2886 = sld [smem:[#allocation2]]
        %v2887 = vstv %s2886
        %v2890 = vunpack.c.l.s4 1966171168
        %v2891 = vunpack.c.0.s8 %v2890
        %v2892 = vlaneseq
        %v2893 = vshrl.u32 %v2892, 7
        %v2894 = vsub.s32 %v2891, %v2893
        %v2895 = vrot.slane %v2821, %v2894
        %v2896 = vcombine.high %v2895, %v2895
        %v2898 = vunpack.c.l.s4 1966171168
        %v2899 = vunpack.c.0.s8 %v2898
        %v2900 = vlaneseq
        %v2901 = vshrl.u32 %v2900, 7
        %v2902 = vsub.s32 %v2899, %v2901
        %v2903 = vrot.slane %v2895, %v2902
        %v2905 = vunpack.c.l.s4 1966171168
        %v2906 = vunpack.c.0.s8 %v2905
        %v2907 = vlaneseq
        %v2908 = vshrl.u32 %v2907, 7
        %v2909 = vsub.s32 %v2906, %v2908
        %v2910 = vrot.slane %v2896, %v2909
        %v2911 = vcombine.high %v2903, %v2903
        %v2912 = vcombine.high %v2910, %v2910
        %2917 = vmatprep.subr.bf16.mxu0 %v2823
        %2918 = vmatpush1.bf16.xpose.msra.mxu0 %v2822
        %2919 = vmatprep.subr.bf16.mxu0 %v2827
        %2920 = vmatpush1.bf16.xpose.msra.mxu0 %v2826
        %2921 = vmatprep.subr.bf16.mxu0 %v2831
        %2922 = vmatpush1.bf16.xpose.msra.mxu0 %v2830
        %2923 = vmatprep.subr.bf16.mxu0 %v2835
        %2924 = vmatpush1.bf16.xpose.msra.mxu0 %v2834
        %2925 = vmatprep.subr.bf16.mxu0 %v2839
        %2926 = vmatpush1.bf16.xpose.msra.mxu0 %v2838
        %2927 = vmatprep.subr.bf16.mxu0 %v2843
        %2928 = vmatpush1.bf16.xpose.msra.mxu0 %v2842
        %2929 = vmatprep.subr.bf16.mxu0 %v2847
        %2930 = vmatpush1.bf16.xpose.msra.mxu0 %v2846
        %2931 = vmatprep.subr.bf16.mxu0 %v2851
        %2932 = vmatpush1.bf16.xpose.msra.mxu0 %v2850
        %2933 = vmatprep.subr.bf16.mxu0 %v2855
        %2934 = vmatpush1.bf16.xpose.msra.mxu0 %v2854
        %2935 = vmatprep.subr.bf16.mxu0 %v2859
        %2936 = vmatpush1.bf16.xpose.msra.mxu0 %v2858
        %2937 = vmatprep.subr.bf16.mxu0 %v2863
        %2938 = vmatpush1.bf16.xpose.msra.mxu0 %v2862
        %2939 = vmatprep.subr.bf16.mxu0 %v2867
        %2940 = vmatpush1.bf16.xpose.msra.mxu0 %v2866
        %2941 = vmatprep.subr.bf16.mxu0 %v2871
        %2942 = vmatpush1.bf16.xpose.msra.mxu0 %v2870
        %2943 = vmatprep.subr.bf16.mxu0 %v2875
        %2944 = vmatpush1.bf16.xpose.msra.mxu0 %v2874
        %2945 = vmatprep.subr.bf16.mxu0 %v2879
        %2946 = vmatpush1.bf16.xpose.msra.mxu0 %v2878
        %2947 = vmatprep.subr.bf16.mxu0 %v2883
        %2948 = vmatpush1.bf16.xpose.msra.mxu0 %v2882
        %2949 = vmatprep.mubr.bf16.mxu0 %v2910
        %2950 = vmatmul.mubr.bf16.gmra.mrb[0].mxu0 %v2903
        %v2951 = vpop.f32.mrb[0].mxu0
        %v2952 = vadd.f32 %v2887, %v2951
        %v2953 = vpop.f32.mrb[0].mxu0
        %v2954 = vadd.f32 %v2887, %v2953
        %v2955 = vpop.f32.mrb[0].mxu0
        %v2956 = vpop.f32.mrb[0].mxu0
        %2957 = vdwg.mxu0
        %2958 = vmatprep.subr.bf16.mxu0 %v2825
        %2959 = vmatpush1.bf16.xpose.msra.mxu0 %v2824
        %2960 = vmatprep.subr.bf16.mxu0 %v2829
        %2961 = vmatpush1.bf16.xpose.msra.mxu0 %v2828
        %2962 = vmatprep.subr.bf16.mxu0 %v2833
        %2963 = vmatpush1.bf16.xpose.msra.mxu0 %v2832
        %2964 = vmatprep.subr.bf16.mxu0 %v2837
        %2965 = vmatpush1.bf16.xpose.msra.mxu0 %v2836
        %2966 = vmatprep.subr.bf16.mxu0 %v2841
        %2967 = vmatpush1.bf16.xpose.msra.mxu0 %v2840
        %2968 = vmatprep.subr.bf16.mxu0 %v2845
        %2969 = vmatpush1.bf16.xpose.msra.mxu0 %v2844
        %2970 = vmatprep.subr.bf16.mxu0 %v2849
        %2971 = vmatpush1.bf16.xpose.msra.mxu0 %v2848
        %2972 = vmatprep.subr.bf16.mxu0 %v2853
        %2973 = vmatpush1.bf16.xpose.msra.mxu0 %v2852
        %2974 = vmatprep.subr.bf16.mxu0 %v2857
        %2975 = vmatpush1.bf16.xpose.msra.mxu0 %v2856
        %2976 = vmatprep.subr.bf16.mxu0 %v2861
        %2977 = vmatpush1.bf16.xpose.msra.mxu0 %v2860
        %2978 = vmatprep.subr.bf16.mxu0 %v2865
        %2979 = vmatpush1.bf16.xpose.msra.mxu0 %v2864
        %2980 = vmatprep.subr.bf16.mxu0 %v2869
        %2981 = vmatpush1.bf16.xpose.msra.mxu0 %v2868
        %2982 = vmatprep.subr.bf16.mxu0 %v2873
        %2983 = vmatpush1.bf16.xpose.msra.mxu0 %v2872
        %2984 = vmatprep.subr.bf16.mxu0 %v2877
        %2985 = vmatpush1.bf16.xpose.msra.mxu0 %v2876
        %2986 = vmatprep.subr.bf16.mxu0 %v2881
        %2987 = vmatpush1.bf16.xpose.msra.mxu0 %v2880
        %2988 = vmatprep.subr.bf16.mxu0 %v2885
        %2989 = vmatpush1.bf16.xpose.msra.mxu0 %v2884
        %2990 = vmatprep.mubr.bf16.mxu0 %v2912
        %2991 = vmatmul.mubr.bf16.gmra.mrb[0].mxu0 %v2911
        %v2992 = vpop.f32.mrb[0].mxu0
        %v2993 = vadd.f32 %v2952, %v2992
        %v2994 = vpop.f32.mrb[0].mxu0
        %v2995 = vadd.f32 %v2954, %v2994
        %v2996 = vpop.f32.mrb[0].mxu0
        %v2997 = vpop.f32.mrb[0].mxu0
        %2998 = vdwg.mxu0
        %v2999 = vmax.f32 %v2993, 0.0
        %v3000 = vmax.f32 %v2995, 0.0
        %v3003 = vcombine.low %v2999, %v3000
        %v3005 = vunpack.c.l.s4 1966171168
        %v3006 = vunpack.c.0.s8 %v3005
        %v3007 = vlaneseq
        %v3008 = vshrl.u32 %v3007, 7
        %v3009 = vsub.s32 %v3006, %v3008
        %v3010 = vrot.slane %v3003, %v3009
        %v3012 = vunpack.c.l.s4 1966171168
        %v3013 = vunpack.c.0.s8 %v3012
        %v3014 = vlaneseq
        %v3015 = vshrl.u32 %v3014, 7
        %v3016 = vsub.s32 %v3013, %v3015
        %v3017 = vrot.slane %v3010, %v3016
        %v3019 = vlaneseq
        %vm3020 = vcmp.ge.s32.totalorder %v3019, 0
        %vm3021 = vcmp.lt.s32.totalorder %v3019, 256
        %vm3022 = vmand %vm3020, %vm3021
        %3023 = vst.msk [vmem:[%s288] sm:$0x3] %vm3022, %v3017
        %s3024 = sand.u32 %s183, 1
        %s3025 = scalar_lea.sflag [#allocation5], %s3024
        %s3026 = sand.u32 %s183, 1
        %s3027 = smul.addr %s3026, 2
        %s3028 = scalar_lea.vmem [#allocation6], %s3027
        // Predicated region
        $region53: #{tpu_custom_call.1} parent=47 // pred_check
          %p3029 = pneg %p193
        $region54: #{tpu_custom_call.1} parent=47 // pred_check_branch
          %3031 = sbr.rel (%p3029) target = $region56
        $region55: #{tpu_custom_call.1} parent=47 // pred_region
          %s3032 = smul.u32 2, %s23
          %s3034 = ssub.s32 32, 32
          %3035 = vsyncadd %s3025, %s3034
          %s3036 = smul.addr %s3032, 16
          %s3037 = scalar_lea.hbm %s7, %s3036
          %s3039 = sshll.u32 %s3028, 4
          %s3040 = int_to_ptr.vmem [resolvable:$true] %s3039
          %3042 = dma.vmem_to_hbm [thread:$0]  %s3040, 32, %s3037, %s3025
        $region56: #{tpu_custom_call.1} parent=47 // pred_fallthru
          _
      $region48: #{tpu_custom_call.1} parent=5 // pred_fallthru
        _
      %p3043 = scmp.le.s32.totalorder 2, %s18
      // Predicated region
      $region57: #{tpu_custom_call.1} parent=5 // pred_check
        %p3044 = pneg %p3043
      $region58: #{tpu_custom_call.1} parent=5 // pred_check_branch
        %3046 = sbr.rel (%p3044) target = $region60
      $region59: #{tpu_custom_call.1} parent=5 // pred_region
        %s3047 = ssub.s32 %s18, 2
        // Predicated region
        $region61: #{tpu_custom_call.1} parent=59 // pred_check
          %p3048 = pneg %p199
        $region62: #{tpu_custom_call.1} parent=59 // pred_check_branch
          %3050 = sbr.rel (%p3048) target = $region64
        $region63: #{tpu_custom_call.1} parent=59 // pred_region
          %s3051 = sand.u32 %s184, 1
          %s3052 = scalar_lea.sflag [#allocation5], %s3051
          %s3053 = sand.u32 %s184, 1
          %s3054 = smul.addr %s3053, 2
          %s3055 = scalar_lea.vmem [#allocation6], %s3054
          %3056 = dma.done %s3052, 32
        $region64: #{tpu_custom_call.1} parent=59 // pred_fallthru
          _
      $region60: #{tpu_custom_call.1} parent=5 // pred_fallthru
        _
    $region6: #{tpu_custom_call.1} parent=1 // loop_footer
      %s22 = sadd.s32 1, %s18
    $region7: #{tpu_custom_call.1} parent=1 // loop_footer_branch
      %17 = sbr.rel target = $region3
    $region8: #{tpu_custom_call.1} parent=1 // loop_exit
      _
    %3057 = vsyncpa [#allocation4], 1
    %s3058 = scalar_lea.sflag [#allocation4], 1
    %3059 = vsyncpa %s3058, 1
    %3060 = vsyncpa [#allocation5], 1
    %s3061 = scalar_lea.sflag [#allocation5], 1
    %3062 = vsyncpa %s3061, 1

</llo_original>
